<compile_context>
chip_gen: v7x
topology: tpu7x:2x2x1
jax: 0.10.0
libtpu: 0.0.40
codegen_flags: <defaults>
</compile_context>

<pallas_src>
import math

import jax
import jax.numpy as jnp
from jax.experimental import pallas as pl
from jax.experimental.pallas import tpu as pltpu

# ---------------- config (small, consistent with the module) ----------------
BATCH = 2
SEQ = 8
HIDDEN = 32
NUM_HEADS = 4
NUM_KV_HEADS = 2
HEAD_DIM = HIDDEN // NUM_HEADS              # 8
KV_DIM = NUM_KV_HEADS * HEAD_DIM            # 16
GROUP = NUM_HEADS // NUM_KV_HEADS           # 2 (repeat_interleave factor)
INTERMEDIATE = 64
EPS = 1e-6                                  # rms_norm_eps used by nn.LayerNorm


def _layernorm(x, w, b, eps):
    # torch nn.LayerNorm: biased variance over last dim.
    mean = jnp.mean(x, axis=-1, keepdims=True)
    var = jnp.mean((x - mean) ** 2, axis=-1, keepdims=True)
    return (x - mean) * jax.lax.rsqrt(var + eps) * w + b


def decoder_layer_kernel(x_ref, ln_ref, wqkv_ref, wo_ref, wgu_ref, wd_ref, o_ref):
    # Single invocation: the whole (B*S, H) activation slab and all weights
    # are resident in VMEM.
    x = x_ref[...].astype(jnp.float32)                         # (B*S, H)

    # ---- input_layernorm ----
    h = _layernorm(x, ln_ref[0], ln_ref[1], EPS)

    # ---- fused QKV projection: one MXU dot instead of three ----
    qkv = jnp.dot(h, wqkv_ref[...], preferred_element_type=jnp.float32)  # (B*S, H+2*KV)
    # Split lanes, then split the sublane axis into (B, S) for batched attention.
    q = qkv[:, :HIDDEN].reshape(BATCH, SEQ, HIDDEN)             # (B, S, H)
    k = qkv[:, HIDDEN:HIDDEN + KV_DIM].reshape(BATCH, SEQ, KV_DIM)
    v = qkv[:, HIDDEN + KV_DIM:].reshape(BATCH, SEQ, KV_DIM)

    inv_sqrt_d = 1.0 / math.sqrt(HEAD_DIM)
    wo = wo_ref[...]                                            # (H, H)

    # ---- GQA attention (no RoPE in this module's forward) ----
    # Per head: batched scores/softmax/PV via 3-D einsum (batch rides the
    # dot_general batch dim), then the head output is folded straight into the
    # o-projection by accumulating (P @ V_h) @ Wo[head rows].
    acc = jnp.zeros((BATCH * SEQ, HIDDEN), jnp.float32)
    for hh in range(NUM_HEADS):                                 # static unroll (4 heads)
        kvh = hh // GROUP                                       # repeat_interleave semantics
        qh = q[:, :, hh * HEAD_DIM:(hh + 1) * HEAD_DIM]         # (B, S, hd)
        kh = k[:, :, kvh * HEAD_DIM:(kvh + 1) * HEAD_DIM]       # (B, S, hd)
        vh = v[:, :, kvh * HEAD_DIM:(kvh + 1) * HEAD_DIM]       # (B, S, hd)
        s = jnp.einsum('bqd,bkd->bqk', qh, kh,
                       preferred_element_type=jnp.float32) * inv_sqrt_d  # (B, S, S)
        s = s - jnp.max(s, axis=-1, keepdims=True)
        p = jnp.exp(s)
        p = p * pl.reciprocal(jnp.sum(p, axis=-1, keepdims=True), approx=True)
        oh = jnp.einsum('bqk,bkd->bqd', p, vh,
                        preferred_element_type=jnp.float32)     # (B, S, hd)
        acc = acc + jnp.dot(oh.reshape(BATCH * SEQ, HEAD_DIM),
                            wo[hh * HEAD_DIM:(hh + 1) * HEAD_DIM, :],
                            preferred_element_type=jnp.float32)  # (B*S, H)
    # TODO(synk): attention_mask add / past_key_value cache concat not implemented
    # (module is exercised with attention_mask=None, past_key_value=None; dropout=eval).

    x = x + acc                                                 # residual 1

    # ---- post_attention_layernorm + SwiGLU MLP (fused gate|up -> 128 lanes) ----
    h2 = _layernorm(x, ln_ref[2], ln_ref[3], EPS)
    gu = jnp.dot(h2, wgu_ref[...], preferred_element_type=jnp.float32)   # (B*S, 2*I)
    g = gu[:, :INTERMEDIATE]
    u = gu[:, INTERMEDIATE:]
    act = g * jax.nn.sigmoid(g)                                 # SiLU
    m = jnp.dot(act * u, wd_ref[...], preferred_element_type=jnp.float32)  # (B*S, H)

    o_ref[...] = (x + m).astype(o_ref.dtype)                    # residual 2


def sapnous_decoder_layer(hidden_states, params):
    B, S, H = hidden_states.shape
    # Wrapper-side packing / flattening (layout plumbing, not compute hoisting).
    x_flat = hidden_states.reshape(B * S, H)                    # batch rides on sublanes
    ln_pack = jnp.stack([params["ln1_w"], params["ln1_b"],
                         params["ln2_w"], params["ln2_b"]], axis=0)          # (4, H)
    w_qkv = jnp.concatenate([params["w_q"], params["w_k"], params["w_v"]], axis=1)  # (H, 64)
    w_gu = jnp.concatenate([params["w_gate"], params["w_up"]], axis=1)       # (H, 128)

    vmem = lambda: pl.BlockSpec(memory_space=pltpu.MemorySpace.VMEM)
    out_flat = pl.pallas_call(
        decoder_layer_kernel,
        out_shape=jax.ShapeDtypeStruct((B * S, H), hidden_states.dtype),
        in_specs=[vmem() for _ in range(6)],
        out_specs=vmem(),
    )(x_flat, ln_pack, w_qkv, params["w_o"], w_gu, params["w_down"])
    return out_flat.reshape(B, S, H)


# ----------------------- pure-JAX reference (torch semantics) ---------------
def reference_decoder_layer(x, p):
    def ln(x, w, b):
        mean = jnp.mean(x, axis=-1, keepdims=True)
        var = jnp.mean((x - mean) ** 2, axis=-1, keepdims=True)
        return (x - mean) / jnp.sqrt(var + EPS) * w + b

    B, S, H = x.shape
    residual = x
    h = ln(x, p["ln1_w"], p["ln1_b"])
    q = h @ p["w_q"]
    k = h @ p["w_k"]
    v = h @ p["w_v"]
    q = q.reshape(B, S, NUM_HEADS, HEAD_DIM).transpose(0, 2, 1, 3)
    k = k.reshape(B, S, NUM_KV_HEADS, HEAD_DIM).transpose(0, 2, 1, 3)
    v = v.reshape(B, S, NUM_KV_HEADS, HEAD_DIM).transpose(0, 2, 1, 3)
    k = jnp.repeat(k, GROUP, axis=1)                            # repeat_interleave
    v = jnp.repeat(v, GROUP, axis=1)
    scores = jnp.einsum("bhqd,bhkd->bhqk", q, k) / math.sqrt(HEAD_DIM)
    w = jax.nn.softmax(scores.astype(jnp.float32), axis=-1)
    attn = jnp.einsum("bhqk,bhkd->bhqd", w, v)
    attn = attn.transpose(0, 2, 1, 3).reshape(B, S, H) @ p["w_o"]
    x = residual + attn
    residual = x
    h2 = ln(x, p["ln2_w"], p["ln2_b"])
    g = h2 @ p["w_gate"]
    u = h2 @ p["w_up"]
    mlp = (g * jax.nn.sigmoid(g) * u) @ p["w_down"]
    return residual + mlp


def make_params(key):
    ks = jax.random.split(key, 11)
    scale = 0.05
    return {
        "ln1_w": 1.0 + 0.1 * jax.random.normal(ks[7], (HIDDEN,), jnp.float32),
        "ln1_b": 0.05 * jax.random.normal(ks[8], (HIDDEN,), jnp.float32),
        "ln2_w": 1.0 + 0.1 * jax.random.normal(ks[9], (HIDDEN,), jnp.float32),
        "ln2_b": 0.05 * jax.random.normal(ks[10], (HIDDEN,), jnp.float32),
        "w_q": scale * jax.random.normal(ks[0], (HIDDEN, HIDDEN), jnp.float32),
        "w_k": scale * jax.random.normal(ks[1], (HIDDEN, KV_DIM), jnp.float32),
        "w_v": scale * jax.random.normal(ks[2], (HIDDEN, KV_DIM), jnp.float32),
        "w_o": scale * jax.random.normal(ks[3], (HIDDEN, HIDDEN), jnp.float32),
        "w_gate": scale * jax.random.normal(ks[4], (HIDDEN, INTERMEDIATE), jnp.float32),
        "w_up": scale * jax.random.normal(ks[5], (HIDDEN, INTERMEDIATE), jnp.float32),
        "w_down": scale * jax.random.normal(ks[6], (INTERMEDIATE, HIDDEN), jnp.float32),
    }


if __name__ == "__main__":
    key = jax.random.PRNGKey(0)
    pkey, xkey = jax.random.split(key)
    params = make_params(pkey)
    x = jax.random.normal(xkey, (BATCH, SEQ, HIDDEN), jnp.float32)

    out = sapnous_decoder_layer(x, params)
    out = jax.block_until_ready(out)

    ref = reference_decoder_layer(x, params)
    assert out.shape == (BATCH, SEQ, HIDDEN)
    # 1e-3 tolerance: pl.reciprocal(approx=True) in the softmax denominator.
    assert jnp.allclose(out, ref, rtol=1e-3, atol=1e-3), float(jnp.max(jnp.abs(out - ref)))

    print("KERNEL_OK")
</pallas_src>

<mosaic_0001>
module attributes {stable_mosaic.version = 11 : i64} {
  func.func @decoder_layer_kernel(%arg0: memref<16x32xf32, #tpu.memory_space<vmem>>, %arg1: memref<4x32xf32, #tpu.memory_space<vmem>>, %arg2: memref<32x64xf32, #tpu.memory_space<vmem>>, %arg3: memref<32x32xf32, #tpu.memory_space<vmem>>, %arg4: memref<32x128xf32, #tpu.memory_space<vmem>>, %arg5: memref<64x32xf32, #tpu.memory_space<vmem>>, %arg6: memref<16x32xf32, #tpu.memory_space<vmem>>) attributes {dimension_semantics = [], scalar_prefetch = 0 : i64, scratch_operands = 0 : i64, tpu.core_type = #tpu.core_type<tc>} {
    %c0 = arith.constant 0 : index
    %c0_0 = arith.constant 0 : index
    %0 = vector.load %arg0[%c0, %c0_0] : memref<16x32xf32, #tpu.memory_space<vmem>>, vector<16x32xf32>
    %c0_1 = arith.constant 0 : index
    %c0_2 = arith.constant 0 : index
    %1 = vector.load %arg1[%c0_1, %c0_2] : memref<4x32xf32, #tpu.memory_space<vmem>>, vector<1x32xf32>
    %2 = vector.shape_cast %1 : vector<1x32xf32> to vector<32xf32>
    %c1 = arith.constant 1 : index
    %c0_3 = arith.constant 0 : index
    %3 = vector.load %arg1[%c1, %c0_3] : memref<4x32xf32, #tpu.memory_space<vmem>>, vector<1x32xf32>
    %4 = vector.shape_cast %3 : vector<1x32xf32> to vector<32xf32>
    %cst = arith.constant dense<0.000000e+00> : vector<16xf32>
    %5 = vector.multi_reduction <add>, %0, %cst [1] : vector<16x32xf32> to vector<16xf32>
    %6 = vector.shape_cast %5 : vector<16xf32> to vector<16x1xf32>
    %cst_4 = arith.constant 3.200000e+01 : f32
    %7 = vector.broadcast %cst_4 : f32 to vector<16x1xf32>
    %8 = arith.divf %6, %7 : vector<16x1xf32>
    %9 = vector.broadcast %8 : vector<16x1xf32> to vector<16x32xf32>
    %10 = arith.subf %0, %9 : vector<16x32xf32>
    %11 = arith.mulf %10, %10 : vector<16x32xf32>
    %cst_5 = arith.constant dense<0.000000e+00> : vector<16xf32>
    %12 = vector.multi_reduction <add>, %11, %cst_5 [1] : vector<16x32xf32> to vector<16xf32>
    %13 = vector.shape_cast %12 : vector<16xf32> to vector<16x1xf32>
    %cst_6 = arith.constant 3.200000e+01 : f32
    %14 = vector.broadcast %cst_6 : f32 to vector<16x1xf32>
    %15 = arith.divf %13, %14 : vector<16x1xf32>
    %16 = vector.broadcast %8 : vector<16x1xf32> to vector<16x32xf32>
    %17 = arith.subf %0, %16 : vector<16x32xf32>
    %cst_7 = arith.constant 9.99999997E-7 : f32
    %18 = vector.broadcast %cst_7 : f32 to vector<16x1xf32>
    %19 = arith.addf %15, %18 : vector<16x1xf32>
    %20 = math.rsqrt %19 : vector<16x1xf32>
    %21 = vector.broadcast %20 : vector<16x1xf32> to vector<16x32xf32>
    %22 = arith.mulf %17, %21 : vector<16x32xf32>
    %23 = vector.shape_cast %2 : vector<32xf32> to vector<1x32xf32>
    %24 = vector.broadcast %23 : vector<1x32xf32> to vector<16x32xf32>
    %25 = arith.mulf %22, %24 : vector<16x32xf32>
    %26 = vector.shape_cast %4 : vector<32xf32> to vector<1x32xf32>
    %27 = vector.broadcast %26 : vector<1x32xf32> to vector<16x32xf32>
    %28 = arith.addf %25, %27 : vector<16x32xf32>
    %c0_8 = arith.constant 0 : index
    %c0_9 = arith.constant 0 : index
    %29 = vector.load %arg2[%c0_8, %c0_9] : memref<32x64xf32, #tpu.memory_space<vmem>>, vector<32x64xf32>
    %cst_10 = arith.constant dense<0.000000e+00> : vector<16x64xf32>
    %30 = tpu.matmul %28, %29, %cst_10 {dimension_numbers = #tpu.dot_dimension_numbers<[1], [0], [0], [1], [0, 0, 1, 1], [], []>} : vector<16x32xf32>, vector<32x64xf32>, vector<16x64xf32> -> vector<16x64xf32>
    %31 = vector.extract_strided_slice %30 {offsets = [0, 0], sizes = [16, 32], strides = [1, 1]} : vector<16x64xf32> to vector<16x32xf32>
    %32 = vector.shape_cast %31 : vector<16x32xf32> to vector<2x8x32xf32>
    %33 = vector.extract_strided_slice %30 {offsets = [0, 32], sizes = [16, 16], strides = [1, 1]} : vector<16x64xf32> to vector<16x16xf32>
    %34 = vector.shape_cast %33 : vector<16x16xf32> to vector<2x8x16xf32>
    %35 = vector.extract_strided_slice %30 {offsets = [0, 48], sizes = [16, 16], strides = [1, 1]} : vector<16x64xf32> to vector<16x16xf32>
    %36 = vector.shape_cast %35 : vector<16x16xf32> to vector<2x8x16xf32>
    %c0_11 = arith.constant 0 : index
    %c0_12 = arith.constant 0 : index
    %37 = vector.load %arg3[%c0_11, %c0_12] : memref<32x32xf32, #tpu.memory_space<vmem>>, vector<32x32xf32>
    %cst_13 = arith.constant 0.000000e+00 : f32
    %38 = vector.broadcast %cst_13 : f32 to vector<16x32xf32>
    %39 = vector.extract_strided_slice %32 {offsets = [0, 0, 0], sizes = [2, 8, 8], strides = [1, 1, 1]} : vector<2x8x32xf32> to vector<2x8x8xf32>
    %40 = vector.extract_strided_slice %34 {offsets = [0, 0, 0], sizes = [2, 8, 8], strides = [1, 1, 1]} : vector<2x8x16xf32> to vector<2x8x8xf32>
    %41 = vector.extract_strided_slice %36 {offsets = [0, 0, 0], sizes = [2, 8, 8], strides = [1, 1, 1]} : vector<2x8x16xf32> to vector<2x8x8xf32>
    "tpu.trace_start"() <{level = 10 : i32, message = "bqd,bkd->bqk"}> : () -> ()
    %cst_14 = arith.constant dense<0.000000e+00> : vector<2x8x8xf32>
    %42 = tpu.matmul %39, %40, %cst_14 {dimension_numbers = #tpu.dot_dimension_numbers<[2], [2], [1], [1], [0, 0, 0, 1, 1, 1], [0], [0]>} : vector<2x8x8xf32>, vector<2x8x8xf32>, vector<2x8x8xf32> -> vector<2x8x8xf32>
    "tpu.trace_stop"() : () -> ()
    %cst_15 = arith.constant 0.353553385 : f32
    %43 = vector.broadcast %cst_15 : f32 to vector<2x8x8xf32>
    %44 = arith.mulf %42, %43 : vector<2x8x8xf32>
    %cst_16 = arith.constant dense<0xFF800000> : vector<2x8xf32>
    %45 = vector.multi_reduction <maximumf>, %44, %cst_16 [2] : vector<2x8x8xf32> to vector<2x8xf32>
    %46 = vector.shape_cast %45 : vector<2x8xf32> to vector<2x8x1xf32>
    %47 = vector.broadcast %46 : vector<2x8x1xf32> to vector<2x8x8xf32>
    %48 = arith.subf %44, %47 : vector<2x8x8xf32>
    %49 = math.exp %48 : vector<2x8x8xf32>
    %cst_17 = arith.constant dense<0.000000e+00> : vector<2x8xf32>
    %50 = vector.multi_reduction <add>, %49, %cst_17 [2] : vector<2x8x8xf32> to vector<2x8xf32>
    %51 = vector.shape_cast %50 : vector<2x8xf32> to vector<2x8x1xf32>
    %52 = tpu.reciprocal %51 {approx = true} : vector<2x8x1xf32> -> vector<2x8x1xf32>
    %53 = vector.broadcast %52 : vector<2x8x1xf32> to vector<2x8x8xf32>
    %54 = arith.mulf %49, %53 : vector<2x8x8xf32>
    "tpu.trace_start"() <{level = 10 : i32, message = "bqk,bkd->bqd"}> : () -> ()
    %cst_18 = arith.constant dense<0.000000e+00> : vector<2x8x8xf32>
    %55 = tpu.matmul %54, %41, %cst_18 {dimension_numbers = #tpu.dot_dimension_numbers<[2], [1], [1], [2], [0, 0, 0, 1, 1, 2], [0], [0]>} : vector<2x8x8xf32>, vector<2x8x8xf32>, vector<2x8x8xf32> -> vector<2x8x8xf32>
    "tpu.trace_stop"() : () -> ()
    %56 = vector.shape_cast %55 : vector<2x8x8xf32> to vector<16x8xf32>
    %57 = vector.extract_strided_slice %37 {offsets = [0, 0], sizes = [8, 32], strides = [1, 1]} : vector<32x32xf32> to vector<8x32xf32>
    %cst_19 = arith.constant dense<0.000000e+00> : vector<16x32xf32>
    %58 = tpu.matmul %56, %57, %cst_19 {dimension_numbers = #tpu.dot_dimension_numbers<[1], [0], [0], [1], [0, 0, 1, 1], [], []>} : vector<16x8xf32>, vector<8x32xf32>, vector<16x32xf32> -> vector<16x32xf32>
    %59 = arith.addf %38, %58 : vector<16x32xf32>
    %60 = vector.extract_strided_slice %32 {offsets = [0, 0, 8], sizes = [2, 8, 8], strides = [1, 1, 1]} : vector<2x8x32xf32> to vector<2x8x8xf32>
    %61 = vector.extract_strided_slice %34 {offsets = [0, 0, 0], sizes = [2, 8, 8], strides = [1, 1, 1]} : vector<2x8x16xf32> to vector<2x8x8xf32>
    %62 = vector.extract_strided_slice %36 {offsets = [0, 0, 0], sizes = [2, 8, 8], strides = [1, 1, 1]} : vector<2x8x16xf32> to vector<2x8x8xf32>
    "tpu.trace_start"() <{level = 10 : i32, message = "bqd,bkd->bqk"}> : () -> ()
    %cst_20 = arith.constant dense<0.000000e+00> : vector<2x8x8xf32>
    %63 = tpu.matmul %60, %61, %cst_20 {dimension_numbers = #tpu.dot_dimension_numbers<[2], [2], [1], [1], [0, 0, 0, 1, 1, 1], [0], [0]>} : vector<2x8x8xf32>, vector<2x8x8xf32>, vector<2x8x8xf32> -> vector<2x8x8xf32>
    "tpu.trace_stop"() : () -> ()
    %cst_21 = arith.constant 0.353553385 : f32
    %64 = vector.broadcast %cst_21 : f32 to vector<2x8x8xf32>
    %65 = arith.mulf %63, %64 : vector<2x8x8xf32>
    %cst_22 = arith.constant dense<0xFF800000> : vector<2x8xf32>
    %66 = vector.multi_reduction <maximumf>, %65, %cst_22 [2] : vector<2x8x8xf32> to vector<2x8xf32>
    %67 = vector.shape_cast %66 : vector<2x8xf32> to vector<2x8x1xf32>
    %68 = vector.broadcast %67 : vector<2x8x1xf32> to vector<2x8x8xf32>
    %69 = arith.subf %65, %68 : vector<2x8x8xf32>
    %70 = math.exp %69 : vector<2x8x8xf32>
    %cst_23 = arith.constant dense<0.000000e+00> : vector<2x8xf32>
    %71 = vector.multi_reduction <add>, %70, %cst_23 [2] : vector<2x8x8xf32> to vector<2x8xf32>
    %72 = vector.shape_cast %71 : vector<2x8xf32> to vector<2x8x1xf32>
    %73 = tpu.reciprocal %72 {approx = true} : vector<2x8x1xf32> -> vector<2x8x1xf32>
    %74 = vector.broadcast %73 : vector<2x8x1xf32> to vector<2x8x8xf32>
    %75 = arith.mulf %70, %74 : vector<2x8x8xf32>
    "tpu.trace_start"() <{level = 10 : i32, message = "bqk,bkd->bqd"}> : () -> ()
    %cst_24 = arith.constant dense<0.000000e+00> : vector<2x8x8xf32>
    %76 = tpu.matmul %75, %62, %cst_24 {dimension_numbers = #tpu.dot_dimension_numbers<[2], [1], [1], [2], [0, 0, 0, 1, 1, 2], [0], [0]>} : vector<2x8x8xf32>, vector<2x8x8xf32>, vector<2x8x8xf32> -> vector<2x8x8xf32>
    "tpu.trace_stop"() : () -> ()
    %77 = vector.shape_cast %76 : vector<2x8x8xf32> to vector<16x8xf32>
    %78 = vector.extract_strided_slice %37 {offsets = [8, 0], sizes = [8, 32], strides = [1, 1]} : vector<32x32xf32> to vector<8x32xf32>
    %cst_25 = arith.constant dense<0.000000e+00> : vector<16x32xf32>
    %79 = tpu.matmul %77, %78, %cst_25 {dimension_numbers = #tpu.dot_dimension_numbers<[1], [0], [0], [1], [0, 0, 1, 1], [], []>} : vector<16x8xf32>, vector<8x32xf32>, vector<16x32xf32> -> vector<16x32xf32>
    %80 = arith.addf %59, %79 : vector<16x32xf32>
    %81 = vector.extract_strided_slice %32 {offsets = [0, 0, 16], sizes = [2, 8, 8], strides = [1, 1, 1]} : vector<2x8x32xf32> to vector<2x8x8xf32>
    %82 = vector.extract_strided_slice %34 {offsets = [0, 0, 8], sizes = [2, 8, 8], strides = [1, 1, 1]} : vector<2x8x16xf32> to vector<2x8x8xf32>
    %83 = vector.extract_strided_slice %36 {offsets = [0, 0, 8], sizes = [2, 8, 8], strides = [1, 1, 1]} : vector<2x8x16xf32> to vector<2x8x8xf32>
    "tpu.trace_start"() <{level = 10 : i32, message = "bqd,bkd->bqk"}> : () -> ()
    %cst_26 = arith.constant dense<0.000000e+00> : vector<2x8x8xf32>
    %84 = tpu.matmul %81, %82, %cst_26 {dimension_numbers = #tpu.dot_dimension_numbers<[2], [2], [1], [1], [0, 0, 0, 1, 1, 1], [0], [0]>} : vector<2x8x8xf32>, vector<2x8x8xf32>, vector<2x8x8xf32> -> vector<2x8x8xf32>
    "tpu.trace_stop"() : () -> ()
    %cst_27 = arith.constant 0.353553385 : f32
    %85 = vector.broadcast %cst_27 : f32 to vector<2x8x8xf32>
    %86 = arith.mulf %84, %85 : vector<2x8x8xf32>
    %cst_28 = arith.constant dense<0xFF800000> : vector<2x8xf32>
    %87 = vector.multi_reduction <maximumf>, %86, %cst_28 [2] : vector<2x8x8xf32> to vector<2x8xf32>
    %88 = vector.shape_cast %87 : vector<2x8xf32> to vector<2x8x1xf32>
    %89 = vector.broadcast %88 : vector<2x8x1xf32> to vector<2x8x8xf32>
    %90 = arith.subf %86, %89 : vector<2x8x8xf32>
    %91 = math.exp %90 : vector<2x8x8xf32>
    %cst_29 = arith.constant dense<0.000000e+00> : vector<2x8xf32>
    %92 = vector.multi_reduction <add>, %91, %cst_29 [2] : vector<2x8x8xf32> to vector<2x8xf32>
    %93 = vector.shape_cast %92 : vector<2x8xf32> to vector<2x8x1xf32>
    %94 = tpu.reciprocal %93 {approx = true} : vector<2x8x1xf32> -> vector<2x8x1xf32>
    %95 = vector.broadcast %94 : vector<2x8x1xf32> to vector<2x8x8xf32>
    %96 = arith.mulf %91, %95 : vector<2x8x8xf32>
    "tpu.trace_start"() <{level = 10 : i32, message = "bqk,bkd->bqd"}> : () -> ()
    %cst_30 = arith.constant dense<0.000000e+00> : vector<2x8x8xf32>
    %97 = tpu.matmul %96, %83, %cst_30 {dimension_numbers = #tpu.dot_dimension_numbers<[2], [1], [1], [2], [0, 0, 0, 1, 1, 2], [0], [0]>} : vector<2x8x8xf32>, vector<2x8x8xf32>, vector<2x8x8xf32> -> vector<2x8x8xf32>
    "tpu.trace_stop"() : () -> ()
    %98 = vector.shape_cast %97 : vector<2x8x8xf32> to vector<16x8xf32>
    %99 = vector.extract_strided_slice %37 {offsets = [16, 0], sizes = [8, 32], strides = [1, 1]} : vector<32x32xf32> to vector<8x32xf32>
    %cst_31 = arith.constant dense<0.000000e+00> : vector<16x32xf32>
    %100 = tpu.matmul %98, %99, %cst_31 {dimension_numbers = #tpu.dot_dimension_numbers<[1], [0], [0], [1], [0, 0, 1, 1], [], []>} : vector<16x8xf32>, vector<8x32xf32>, vector<16x32xf32> -> vector<16x32xf32>
    %101 = arith.addf %80, %100 : vector<16x32xf32>
    %102 = vector.extract_strided_slice %32 {offsets = [0, 0, 24], sizes = [2, 8, 8], strides = [1, 1, 1]} : vector<2x8x32xf32> to vector<2x8x8xf32>
    %103 = vector.extract_strided_slice %34 {offsets = [0, 0, 8], sizes = [2, 8, 8], strides = [1, 1, 1]} : vector<2x8x16xf32> to vector<2x8x8xf32>
    %104 = vector.extract_strided_slice %36 {offsets = [0, 0, 8], sizes = [2, 8, 8], strides = [1, 1, 1]} : vector<2x8x16xf32> to vector<2x8x8xf32>
    "tpu.trace_start"() <{level = 10 : i32, message = "bqd,bkd->bqk"}> : () -> ()
    %cst_32 = arith.constant dense<0.000000e+00> : vector<2x8x8xf32>
    %105 = tpu.matmul %102, %103, %cst_32 {dimension_numbers = #tpu.dot_dimension_numbers<[2], [2], [1], [1], [0, 0, 0, 1, 1, 1], [0], [0]>} : vector<2x8x8xf32>, vector<2x8x8xf32>, vector<2x8x8xf32> -> vector<2x8x8xf32>
    "tpu.trace_stop"() : () -> ()
    %cst_33 = arith.constant 0.353553385 : f32
    %106 = vector.broadcast %cst_33 : f32 to vector<2x8x8xf32>
    %107 = arith.mulf %105, %106 : vector<2x8x8xf32>
    %cst_34 = arith.constant dense<0xFF800000> : vector<2x8xf32>
    %108 = vector.multi_reduction <maximumf>, %107, %cst_34 [2] : vector<2x8x8xf32> to vector<2x8xf32>
    %109 = vector.shape_cast %108 : vector<2x8xf32> to vector<2x8x1xf32>
    %110 = vector.broadcast %109 : vector<2x8x1xf32> to vector<2x8x8xf32>
    %111 = arith.subf %107, %110 : vector<2x8x8xf32>
    %112 = math.exp %111 : vector<2x8x8xf32>
    %cst_35 = arith.constant dense<0.000000e+00> : vector<2x8xf32>
    %113 = vector.multi_reduction <add>, %112, %cst_35 [2] : vector<2x8x8xf32> to vector<2x8xf32>
    %114 = vector.shape_cast %113 : vector<2x8xf32> to vector<2x8x1xf32>
    %115 = tpu.reciprocal %114 {approx = true} : vector<2x8x1xf32> -> vector<2x8x1xf32>
    %116 = vector.broadcast %115 : vector<2x8x1xf32> to vector<2x8x8xf32>
    %117 = arith.mulf %112, %116 : vector<2x8x8xf32>
    "tpu.trace_start"() <{level = 10 : i32, message = "bqk,bkd->bqd"}> : () -> ()
    %cst_36 = arith.constant dense<0.000000e+00> : vector<2x8x8xf32>
    %118 = tpu.matmul %117, %104, %cst_36 {dimension_numbers = #tpu.dot_dimension_numbers<[2], [1], [1], [2], [0, 0, 0, 1, 1, 2], [0], [0]>} : vector<2x8x8xf32>, vector<2x8x8xf32>, vector<2x8x8xf32> -> vector<2x8x8xf32>
    "tpu.trace_stop"() : () -> ()
    %119 = vector.shape_cast %118 : vector<2x8x8xf32> to vector<16x8xf32>
    %120 = vector.extract_strided_slice %37 {offsets = [24, 0], sizes = [8, 32], strides = [1, 1]} : vector<32x32xf32> to vector<8x32xf32>
    %cst_37 = arith.constant dense<0.000000e+00> : vector<16x32xf32>
    %121 = tpu.matmul %119, %120, %cst_37 {dimension_numbers = #tpu.dot_dimension_numbers<[1], [0], [0], [1], [0, 0, 1, 1], [], []>} : vector<16x8xf32>, vector<8x32xf32>, vector<16x32xf32> -> vector<16x32xf32>
    %122 = arith.addf %101, %121 : vector<16x32xf32>
    %123 = arith.addf %0, %122 : vector<16x32xf32>
    %c2 = arith.constant 2 : index
    %c0_38 = arith.constant 0 : index
    %124 = vector.load %arg1[%c2, %c0_38] : memref<4x32xf32, #tpu.memory_space<vmem>>, vector<1x32xf32>
    %125 = vector.shape_cast %124 : vector<1x32xf32> to vector<32xf32>
    %c3 = arith.constant 3 : index
    %c0_39 = arith.constant 0 : index
    %126 = vector.load %arg1[%c3, %c0_39] : memref<4x32xf32, #tpu.memory_space<vmem>>, vector<1x32xf32>
    %127 = vector.shape_cast %126 : vector<1x32xf32> to vector<32xf32>
    %cst_40 = arith.constant dense<0.000000e+00> : vector<16xf32>
    %128 = vector.multi_reduction <add>, %123, %cst_40 [1] : vector<16x32xf32> to vector<16xf32>
    %129 = vector.shape_cast %128 : vector<16xf32> to vector<16x1xf32>
    %cst_41 = arith.constant 3.200000e+01 : f32
    %130 = vector.broadcast %cst_41 : f32 to vector<16x1xf32>
    %131 = arith.divf %129, %130 : vector<16x1xf32>
    %132 = vector.broadcast %131 : vector<16x1xf32> to vector<16x32xf32>
    %133 = arith.subf %123, %132 : vector<16x32xf32>
    %134 = arith.mulf %133, %133 : vector<16x32xf32>
    %cst_42 = arith.constant dense<0.000000e+00> : vector<16xf32>
    %135 = vector.multi_reduction <add>, %134, %cst_42 [1] : vector<16x32xf32> to vector<16xf32>
    %136 = vector.shape_cast %135 : vector<16xf32> to vector<16x1xf32>
    %cst_43 = arith.constant 3.200000e+01 : f32
    %137 = vector.broadcast %cst_43 : f32 to vector<16x1xf32>
    %138 = arith.divf %136, %137 : vector<16x1xf32>
    %139 = vector.broadcast %131 : vector<16x1xf32> to vector<16x32xf32>
    %140 = arith.subf %123, %139 : vector<16x32xf32>
    %cst_44 = arith.constant 9.99999997E-7 : f32
    %141 = vector.broadcast %cst_44 : f32 to vector<16x1xf32>
    %142 = arith.addf %138, %141 : vector<16x1xf32>
    %143 = math.rsqrt %142 : vector<16x1xf32>
    %144 = vector.broadcast %143 : vector<16x1xf32> to vector<16x32xf32>
    %145 = arith.mulf %140, %144 : vector<16x32xf32>
    %146 = vector.shape_cast %125 : vector<32xf32> to vector<1x32xf32>
    %147 = vector.broadcast %146 : vector<1x32xf32> to vector<16x32xf32>
    %148 = arith.mulf %145, %147 : vector<16x32xf32>
    %149 = vector.shape_cast %127 : vector<32xf32> to vector<1x32xf32>
    %150 = vector.broadcast %149 : vector<1x32xf32> to vector<16x32xf32>
    %151 = arith.addf %148, %150 : vector<16x32xf32>
    %c0_45 = arith.constant 0 : index
    %c0_46 = arith.constant 0 : index
    %152 = vector.load %arg4[%c0_45, %c0_46] : memref<32x128xf32, #tpu.memory_space<vmem>>, vector<32x128xf32>
    %cst_47 = arith.constant dense<0.000000e+00> : vector<16x128xf32>
    %153 = tpu.matmul %151, %152, %cst_47 {dimension_numbers = #tpu.dot_dimension_numbers<[1], [0], [0], [1], [0, 0, 1, 1], [], []>} : vector<16x32xf32>, vector<32x128xf32>, vector<16x128xf32> -> vector<16x128xf32>
    %154 = vector.extract_strided_slice %153 {offsets = [0, 0], sizes = [16, 64], strides = [1, 1]} : vector<16x128xf32> to vector<16x64xf32>
    %155 = vector.extract_strided_slice %153 {offsets = [0, 64], sizes = [16, 64], strides = [1, 1]} : vector<16x128xf32> to vector<16x64xf32>
    %156 = arith.negf %154 : vector<16x64xf32>
    %157 = math.exp %156 : vector<16x64xf32>
    %cst_48 = arith.constant 1.000000e+00 : f32
    %158 = vector.broadcast %cst_48 : f32 to vector<16x64xf32>
    %159 = arith.addf %158, %157 : vector<16x64xf32>
    %160 = arith.divf %158, %159 : vector<16x64xf32>
    %161 = arith.mulf %154, %160 : vector<16x64xf32>
    %162 = arith.mulf %161, %155 : vector<16x64xf32>
    %c0_49 = arith.constant 0 : index
    %c0_50 = arith.constant 0 : index
    %163 = vector.load %arg5[%c0_49, %c0_50] : memref<64x32xf32, #tpu.memory_space<vmem>>, vector<64x32xf32>
    %cst_51 = arith.constant dense<0.000000e+00> : vector<16x32xf32>
    %164 = tpu.matmul %162, %163, %cst_51 {dimension_numbers = #tpu.dot_dimension_numbers<[1], [0], [0], [1], [0, 0, 1, 1], [], []>} : vector<16x64xf32>, vector<64x32xf32>, vector<16x32xf32> -> vector<16x32xf32>
    %165 = arith.addf %123, %164 : vector<16x32xf32>
    %c0_52 = arith.constant 0 : index
    %c0_53 = arith.constant 0 : index
    %166 = vector.load %arg6[%c0_52, %c0_53] : memref<16x32xf32, #tpu.memory_space<vmem>>, vector<16x32xf32>
    tpu.vector_store %arg6[%c0_52, %c0_53], %165 {strides = array<i32>} : memref<16x32xf32, #tpu.memory_space<vmem>>, vector<16x32xf32>,
    return
  }
}

</mosaic_0001>

<llo_original>
// kernel: tpu_custom_call.1
$region0: #{tpu_custom_call.1}
  #allocation0 [shape = 'u32[]', space=smem, size = 0x4, offset = 0x4, fixed_abs, tag = 'smem constant byte address 0x4 - core index']
  #allocation1 [shape = 'u32[144,128]{1,0:T(1,128)}', space=vmem, size = 0x12000, scoped, tag = 'internal scratch']
  %s0 = inlined_call_operand.hbm [shape: f32[16,32], index: 0, kind: input, shape index: {}]
  %s1 = inlined_call_operand.hbm [shape: f32[4,32], index: 1, kind: input, shape index: {}]
  %s2 = inlined_call_operand.vmem [shape: f32[32,64], index: 2, kind: input, shape index: {}]
  %s3 = inlined_call_operand.vmem [shape: f32[32,32], index: 3, kind: input, shape index: {}]
  %s4 = inlined_call_operand.vmem [shape: f32[32,128], index: 4, kind: input, shape index: {}]
  %s5 = inlined_call_operand.vmem [shape: f32[64,32], index: 5, kind: input, shape index: {}]
  %s6 = inlined_call_operand.hbm [shape: f32[16,32], index: 6, kind: output, shape index: {}]
  %s7 = sld [smem:[#allocation0]]
  $region42: #{tpu_custom_call.1} parent=0
    _
  %s9 = ssub.s32 1, %s7
  %s10 = scalar_select 0, %s9, %s7
  $region1: #{tpu_custom_call.1} parent=0
    #allocation2 [shape = 'u8[8192]{0}', space=vmem, size = 0x2000, scoped, tag = 'input window, operand 0, single buffered']
    #allocation3 [shape = 's32[1]{0}', space=sflag, size = 0x4, scoped, tag = 'scoped memory for tpu_custom_call.1']
    #allocation4 [shape = 's32[1]{0}', space=sflag, size = 0x4, scoped, tag = 'scoped memory for tpu_custom_call.1']
    #allocation5 [shape = 'u8[2048]{0}', space=vmem, size = 0x800, scoped, tag = 'input window, operand 1, single buffered']
    #allocation6 [shape = 's32[1]{0}', space=sflag, size = 0x4, scoped, tag = 'scoped memory for tpu_custom_call.1']
    #allocation7 [shape = 'u8[8192]{0}', space=vmem, size = 0x2000, scoped, tag = 'output window, operand 0, single buffered']
    %11 = vsyncpa [#allocation3], 0
    %12 = vsyncpa [#allocation6], 0
    %13 = vsyncpa [#allocation4], 0
    // Predicated region
    $region2: #{tpu_custom_call.1} parent=1 // pred_check
      _
    $region3: #{tpu_custom_call.1} parent=1 // pred_check_branch
      %15 = sbr.rel (0) target = $region5
    $region4: #{tpu_custom_call.1} parent=1 // pred_region
      %s17 = ssub.s32 256, 256
      %18 = vsyncadd [#allocation3], %s17
      %s19 = sshll.u32 [#allocation2], 4
      %s20 = int_to_ptr.vmem [resolvable:$true] %s19
      %25 = dma.hbm_to_vmem [thread:$0]  %s0, 256, %s20, [#allocation3], 128, 128, 8
    $region5: #{tpu_custom_call.1} parent=1 // pred_fallthru
      _
    // Predicated region
    $region6: #{tpu_custom_call.1} parent=1 // pred_check
      _
    $region7: #{tpu_custom_call.1} parent=1 // pred_check_branch
      %27 = sbr.rel (0) target = $region9
    $region8: #{tpu_custom_call.1} parent=1 // pred_region
      %s29 = ssub.s32 64, 64
      %30 = vsyncadd [#allocation6], %s29
      %s32 = sshll.u32 [#allocation5], 4
      %s33 = int_to_ptr.vmem [resolvable:$true] %s32
      %35 = dma.hbm_to_vmem [thread:$0]  %s1, 64, %s33, [#allocation6]
    $region9: #{tpu_custom_call.1} parent=1 // pred_fallthru
      _
    // Predicated region
    $region10: #{tpu_custom_call.1} parent=1 // pred_check
      _
    $region11: #{tpu_custom_call.1} parent=1 // pred_check_branch
      %37 = sbr.rel (0) target = $region13
    $region12: #{tpu_custom_call.1} parent=1 // pred_region
      _
    $region13: #{tpu_custom_call.1} parent=1 // pred_fallthru
      _
    // Predicated region
    $region14: #{tpu_custom_call.1} parent=1 // pred_check
      _
    $region15: #{tpu_custom_call.1} parent=1 // pred_check_branch
      %39 = sbr.rel (0) target = $region17
    $region16: #{tpu_custom_call.1} parent=1 // pred_region
      _
    $region17: #{tpu_custom_call.1} parent=1 // pred_fallthru
      _
    // Predicated region
    $region18: #{tpu_custom_call.1} parent=1 // pred_check
      _
    $region19: #{tpu_custom_call.1} parent=1 // pred_check_branch
      %41 = sbr.rel (0) target = $region21
    $region20: #{tpu_custom_call.1} parent=1 // pred_region
      _
    $region21: #{tpu_custom_call.1} parent=1 // pred_fallthru
      _
    // Predicated region
    $region22: #{tpu_custom_call.1} parent=1 // pred_check
      _
    $region23: #{tpu_custom_call.1} parent=1 // pred_check_branch
      %43 = sbr.rel (0) target = $region25
    $region24: #{tpu_custom_call.1} parent=1 // pred_region
      _
    $region25: #{tpu_custom_call.1} parent=1 // pred_fallthru
      _
    // Predicated region
    $region26: #{tpu_custom_call.1} parent=1 // pred_check
      _
    $region27: #{tpu_custom_call.1} parent=1 // pred_check_branch
      %45 = sbr.rel (0) target = $region29
    $region28: #{tpu_custom_call.1} parent=1 // pred_region
      %46 = dma.done [#allocation3], 256
    $region29: #{tpu_custom_call.1} parent=1 // pred_fallthru
      _
    // Predicated region
    $region30: #{tpu_custom_call.1} parent=1 // pred_check
      _
    $region31: #{tpu_custom_call.1} parent=1 // pred_check_branch
      %48 = sbr.rel (0) target = $region33
    $region32: #{tpu_custom_call.1} parent=1 // pred_region
      %49 = dma.done [#allocation6], 64
    $region33: #{tpu_custom_call.1} parent=1 // pred_fallthru
      _
    %v50 = vld [vmem:[#allocation2] sm:$0xff]
    %v51 = vld [vmem:[#allocation2 + $0x8] sm:$0xff]
    %v52 = vld [vmem:[#allocation5] sm:$0x1]
    %v53 = vld [vmem:[#allocation5 + $0x1] sm:$0x1]
    %vm54 = vcmask 261120
    %v55 = vsel %vm54, %v50, 0.0
    %56 = vadd.xlane.f32.xlu0 %v55
    %v57 = vpop.xlane.xlu0 %56
    %v58 = vsel %vm54, %v51, 0.0
    %59 = vadd.xlane.f32.xlu0 %v58
    %v60 = vpop.xlane.xlu0 %59
    %v61 = vrcp.pop 32.0
    %v62 = vmul.f32 %v57, %v61
    %v63 = vmul.f32 %v60, %v61
    %v64 = vsub.f32 %v50, %v62
    %v65 = vsub.f32 %v51, %v63
    %v66 = vmul.f32 %v64, %v64
    %v67 = vmul.f32 %v65, %v65
    %v68 = vsel %vm54, %v66, 0.0
    %69 = vadd.xlane.f32.xlu0 %v68
    %v70 = vpop.xlane.xlu0 %69
    %v71 = vsel %vm54, %v67, 0.0
    %72 = vadd.xlane.f32.xlu0 %v71
    %v73 = vpop.xlane.xlu0 %72
    %v74 = vmul.f32 %v70, %v61
    %v75 = vmul.f32 %v73, %v61
    %v76 = vadd.f32 %v74, 1e-06
    %v77 = vadd.f32 %v75, 1e-06
    %v78 = vrsqrt.pop %v76
    %v79 = vrsqrt.pop %v77
    %v80 = vmul.f32 %v64, %v78
    %v81 = vmul.f32 %v65, %v79
    %v82 = vlaneseq
    %v83 = vshrl.u32 %v82, 7
    %v84 = vsub.s32 0, %v83
    %v85 = vrot.slane %v52, %v84
    %v86 = vmul.f32 %v80, %v85
    %v87 = vmul.f32 %v81, %v85
    %v88 = vlaneseq
    %v89 = vshrl.u32 %v88, 7
    %v90 = vsub.s32 0, %v89
    %v91 = vrot.slane %v53, %v90
    %v92 = vadd.f32 %v86, %v91
    %v93 = vadd.f32 %v87, %v91
    %v94 = vld [vmem:[%s2] sm:$0xff]
    %v95 = vld [vmem:[%s2 + $0x8] sm:$0xff]
    %v96 = vld [vmem:[%s2 + $0x10] sm:$0xff]
    %v97 = vld [vmem:[%s2 + $0x18] sm:$0xff]
    %v99 = vsel %vm54, %v92, 0
    %v102 = vsel %vm54, %v93, 0
    %104 = vmatprep.subr.mxu0 0.0
    %105 = vmatpush1.msra.mxu0 %v94
    %106 = vmatprep.subr.mxu0 0.0
    %107 = vmatpush1.msra.mxu0 %v95
    %108 = vmatprep.subr.mxu0 0.0
    %109 = vmatpush1.msra.mxu0 %v96
    %110 = vmatprep.subr.mxu0 0.0
    %111 = vmatpush1.msra.mxu0 %v97
    %112 = vmatprep.subr.mxu0 0.0
    %113 = vmatpush1.msra.mxu0 0.0
    %114 = vmatprep.subr.mxu0 0.0
    %115 = vmatpush1.msra.mxu0 0.0
    %116 = vmatprep.subr.mxu0 0.0
    %117 = vmatpush1.msra.mxu0 0.0
    %118 = vmatprep.subr.mxu0 0.0
    %119 = vmatpush1.msra.mxu0 0.0
    %120 = vmatprep.subr.mxu0 0.0
    %121 = vmatpush1.msra.mxu0 0.0
    %122 = vmatprep.subr.mxu0 0.0
    %123 = vmatpush1.msra.mxu0 0.0
    %124 = vmatprep.subr.mxu0 0.0
    %125 = vmatpush1.msra.mxu0 0.0
    %126 = vmatprep.subr.mxu0 0.0
    %127 = vmatpush1.msra.mxu0 0.0
    %128 = vmatprep.subr.mxu0 0.0
    %129 = vmatpush1.msra.mxu0 0.0
    %130 = vmatprep.subr.mxu0 0.0
    %131 = vmatpush1.msra.mxu0 0.0
    %132 = vmatprep.subr.mxu0 0.0
    %133 = vmatpush1.msra.mxu0 0.0
    %134 = vmatprep.subr.mxu0 0.0
    %135 = vmatpush1.msra.mxu0 0.0
    %136 = vmatprep.subr.mxu0 0.0
    %137 = vmatpush1.msra.mxu0 0.0
    %138 = vmatprep.subr.mxu0 0.0
    %139 = vmatpush1.msra.mxu0 0.0
    %140 = vmatprep.subr.mxu0 0.0
    %141 = vmatpush1.msra.mxu0 0.0
    %142 = vmatprep.subr.mxu0 0.0
    %143 = vmatpush1.msra.mxu0 0.0
    %144 = vmatprep.subr.mxu0 0.0
    %145 = vmatpush1.msra.mxu0 0.0
    %146 = vmatprep.subr.mxu0 0.0
    %147 = vmatpush1.msra.mxu0 0.0
    %148 = vmatprep.subr.mxu0 0.0
    %149 = vmatpush1.msra.mxu0 0.0
    %150 = vmatprep.subr.mxu0 0.0
    %151 = vmatpush1.msra.mxu0 0.0
    %152 = vmatprep.subr.mxu0 0.0
    %153 = vmatpush1.msra.mxu0 0.0
    %154 = vmatprep.subr.mxu0 0.0
    %155 = vmatpush1.msra.mxu0 0.0
    %156 = vmatprep.subr.mxu0 0.0
    %157 = vmatpush1.msra.mxu0 0.0
    %158 = vmatprep.subr.mxu0 0.0
    %159 = vmatpush1.msra.mxu0 0.0
    %160 = vmatprep.subr.mxu0 0.0
    %161 = vmatpush1.msra.mxu0 0.0
    %162 = vmatprep.subr.mxu0 0.0
    %163 = vmatpush1.msra.mxu0 0.0
    %164 = vmatprep.subr.mxu0 0.0
    %165 = vmatpush1.msra.mxu0 0.0
    %166 = vmatprep.subr.mxu0 0.0
    %167 = vmatpush1.msra.mxu0 0.0
    %168 = vmatprep.mubr.f32.mxu0 0.0
    %169 = vmatmul.mubr.f32.gmra.mrb[0].mxu0 %v99
    %v170 = vpop.f32.mrb[0].mxu0
    %v171 = vadd.f32 0.0, %v170
    %v172 = vpop.f32.mrb[0].mxu0
    %173 = vmatprep.mubr.f32.mxu0 0.0
    %174 = vmatmul.mubr.f32.gmra.mrb[0].mxu0 %v102
    %v175 = vpop.f32.mrb[0].mxu0
    %v176 = vadd.f32 0.0, %v175
    %v177 = vpop.f32.mrb[0].mxu0
    %178 = vdwg.mxu0
    %v179 = vld [vmem:[%s3] sm:$0xff]
    %v180 = vld [vmem:[%s3 + $0x8] sm:$0xff]
    %v181 = vld [vmem:[%s3 + $0x10] sm:$0xff]
    %v182 = vld [vmem:[%s3 + $0x18] sm:$0xff]
    %184 = vrot.lane.b32.xlu0 %v171, 96
    %v185 = vpop.permute.xlu0 %184
    %vm186 = vcmask 64512
    %v187 = vsel %vm186, %v171, 0
    %v189 = vsel %vm186, %v185, 0
    %191 = vmatprep.subr.mxu0 0.0
    %192 = vmatpush1.xpose.msra.mxu0 %v189
    %193 = vmatprep.subr.mxu0 0.0
    %194 = vmatpush1.xpose.msra.mxu0 0.0
    %195 = vmatprep.subr.mxu0 0.0
    %196 = vmatpush1.xpose.msra.mxu0 0.0
    %197 = vmatprep.subr.mxu0 0.0
    %198 = vmatpush1.xpose.msra.mxu0 0.0
    %199 = vmatprep.subr.mxu0 0.0
    %200 = vmatpush1.xpose.msra.mxu0 0.0
    %201 = vmatprep.subr.mxu0 0.0
    %202 = vmatpush1.xpose.msra.mxu0 0.0
    %203 = vmatprep.subr.mxu0 0.0
    %204 = vmatpush1.xpose.msra.mxu0 0.0
    %205 = vmatprep.subr.mxu0 0.0
    %206 = vmatpush1.xpose.msra.mxu0 0.0
    %207 = vmatprep.subr.mxu0 0.0
    %208 = vmatpush1.xpose.msra.mxu0 0.0
    %209 = vmatprep.subr.mxu0 0.0
    %210 = vmatpush1.xpose.msra.mxu0 0.0
    %211 = vmatprep.subr.mxu0 0.0
    %212 = vmatpush1.xpose.msra.mxu0 0.0
    %213 = vmatprep.subr.mxu0 0.0
    %214 = vmatpush1.xpose.msra.mxu0 0.0
    %215 = vmatprep.subr.mxu0 0.0
    %216 = vmatpush1.xpose.msra.mxu0 0.0
    %217 = vmatprep.subr.mxu0 0.0
    %218 = vmatpush1.xpose.msra.mxu0 0.0
    %219 = vmatprep.subr.mxu0 0.0
    %220 = vmatpush1.xpose.msra.mxu0 0.0
    %221 = vmatprep.subr.mxu0 0.0
    %222 = vmatpush1.xpose.msra.mxu0 0.0
    %223 = vmatprep.subr.mxu0 0.0
    %224 = vmatpush1.xpose.msra.mxu0 0.0
    %225 = vmatprep.subr.mxu0 0.0
    %226 = vmatpush1.xpose.msra.mxu0 0.0
    %227 = vmatprep.subr.mxu0 0.0
    %228 = vmatpush1.xpose.msra.mxu0 0.0
    %229 = vmatprep.subr.mxu0 0.0
    %230 = vmatpush1.xpose.msra.mxu0 0.0
    %231 = vmatprep.subr.mxu0 0.0
    %232 = vmatpush1.xpose.msra.mxu0 0.0
    %233 = vmatprep.subr.mxu0 0.0
    %234 = vmatpush1.xpose.msra.mxu0 0.0
    %235 = vmatprep.subr.mxu0 0.0
    %236 = vmatpush1.xpose.msra.mxu0 0.0
    %237 = vmatprep.subr.mxu0 0.0
    %238 = vmatpush1.xpose.msra.mxu0 0.0
    %239 = vmatprep.subr.mxu0 0.0
    %240 = vmatpush1.xpose.msra.mxu0 0.0
    %241 = vmatprep.subr.mxu0 0.0
    %242 = vmatpush1.xpose.msra.mxu0 0.0
    %243 = vmatprep.subr.mxu0 0.0
    %244 = vmatpush1.xpose.msra.mxu0 0.0
    %245 = vmatprep.subr.mxu0 0.0
    %246 = vmatpush1.xpose.msra.mxu0 0.0
    %247 = vmatprep.subr.mxu0 0.0
    %248 = vmatpush1.xpose.msra.mxu0 0.0
    %249 = vmatprep.subr.mxu0 0.0
    %250 = vmatpush1.xpose.msra.mxu0 0.0
    %251 = vmatprep.subr.mxu0 0.0
    %252 = vmatpush1.xpose.msra.mxu0 0.0
    %253 = vmatprep.subr.mxu0 0.0
    %254 = vmatpush1.xpose.msra.mxu0 0.0
    %255 = vmatprep.mubr.f32.mxu0 0.0
    %256 = vmatmul.mubr.f32.gmra.mrb[0].mxu0 %v187
    %v257 = vpop.f32.mrb[0].mxu0
    %v258 = vadd.f32 0.0, %v257
    %v259 = vpop.f32.mrb[0].mxu0
    %260 = vdwg.mxu0
    %262 = vrot.lane.b32.xlu0 %v176, 96
    %v263 = vpop.permute.xlu0 %262
    %v264 = vsel %vm186, %v176, 0
    %v266 = vsel %vm186, %v263, 0
    %268 = vmatprep.subr.mxu0 0.0
    %269 = vmatpush1.xpose.msra.mxu0 %v266
    %270 = vmatprep.subr.mxu0 0.0
    %271 = vmatpush1.xpose.msra.mxu0 0.0
    %272 = vmatprep.subr.mxu0 0.0
    %273 = vmatpush1.xpose.msra.mxu0 0.0
    %274 = vmatprep.subr.mxu0 0.0
    %275 = vmatpush1.xpose.msra.mxu0 0.0
    %276 = vmatprep.subr.mxu0 0.0
    %277 = vmatpush1.xpose.msra.mxu0 0.0
    %278 = vmatprep.subr.mxu0 0.0
    %279 = vmatpush1.xpose.msra.mxu0 0.0
    %280 = vmatprep.subr.mxu0 0.0
    %281 = vmatpush1.xpose.msra.mxu0 0.0
    %282 = vmatprep.subr.mxu0 0.0
    %283 = vmatpush1.xpose.msra.mxu0 0.0
    %284 = vmatprep.subr.mxu0 0.0
    %285 = vmatpush1.xpose.msra.mxu0 0.0
    %286 = vmatprep.subr.mxu0 0.0
    %287 = vmatpush1.xpose.msra.mxu0 0.0
    %288 = vmatprep.subr.mxu0 0.0
    %289 = vmatpush1.xpose.msra.mxu0 0.0
    %290 = vmatprep.subr.mxu0 0.0
    %291 = vmatpush1.xpose.msra.mxu0 0.0
    %292 = vmatprep.subr.mxu0 0.0
    %293 = vmatpush1.xpose.msra.mxu0 0.0
    %294 = vmatprep.subr.mxu0 0.0
    %295 = vmatpush1.xpose.msra.mxu0 0.0
    %296 = vmatprep.subr.mxu0 0.0
    %297 = vmatpush1.xpose.msra.mxu0 0.0
    %298 = vmatprep.subr.mxu0 0.0
    %299 = vmatpush1.xpose.msra.mxu0 0.0
    %300 = vmatprep.subr.mxu0 0.0
    %301 = vmatpush1.xpose.msra.mxu0 0.0
    %302 = vmatprep.subr.mxu0 0.0
    %303 = vmatpush1.xpose.msra.mxu0 0.0
    %304 = vmatprep.subr.mxu0 0.0
    %305 = vmatpush1.xpose.msra.mxu0 0.0
    %306 = vmatprep.subr.mxu0 0.0
    %307 = vmatpush1.xpose.msra.mxu0 0.0
    %308 = vmatprep.subr.mxu0 0.0
    %309 = vmatpush1.xpose.msra.mxu0 0.0
    %310 = vmatprep.subr.mxu0 0.0
    %311 = vmatpush1.xpose.msra.mxu0 0.0
    %312 = vmatprep.subr.mxu0 0.0
    %313 = vmatpush1.xpose.msra.mxu0 0.0
    %314 = vmatprep.subr.mxu0 0.0
    %315 = vmatpush1.xpose.msra.mxu0 0.0
    %316 = vmatprep.subr.mxu0 0.0
    %317 = vmatpush1.xpose.msra.mxu0 0.0
    %318 = vmatprep.subr.mxu0 0.0
    %319 = vmatpush1.xpose.msra.mxu0 0.0
    %320 = vmatprep.subr.mxu0 0.0
    %321 = vmatpush1.xpose.msra.mxu0 0.0
    %322 = vmatprep.subr.mxu0 0.0
    %323 = vmatpush1.xpose.msra.mxu0 0.0
    %324 = vmatprep.subr.mxu0 0.0
    %325 = vmatpush1.xpose.msra.mxu0 0.0
    %326 = vmatprep.subr.mxu0 0.0
    %327 = vmatpush1.xpose.msra.mxu0 0.0
    %328 = vmatprep.subr.mxu0 0.0
    %329 = vmatpush1.xpose.msra.mxu0 0.0
    %330 = vmatprep.subr.mxu0 0.0
    %331 = vmatpush1.xpose.msra.mxu0 0.0
    %332 = vmatprep.mubr.f32.mxu0 0.0
    %333 = vmatmul.mubr.f32.gmra.mrb[0].mxu0 %v264
    %v334 = vpop.f32.mrb[0].mxu0
    %v335 = vadd.f32 0.0, %v334
    %v336 = vpop.f32.mrb[0].mxu0
    %337 = vdwg.mxu0
    %v338 = vmul.f32 %v258, 0.35355338
    %v339 = vmul.f32 %v335, 0.35355338
    %v340 = vsel %vm186, %v338, -inf
    %341 = vmax.xlane.f32.xlu0 %v340
    %v342 = vpop.xlane.xlu0 %341
    %v343 = vsel %vm186, %v339, -inf
    %344 = vmax.xlane.f32.xlu0 %v343
    %v345 = vpop.xlane.xlu0 %344
    %v346 = vsub.f32 %v338, %v342
    %v347 = vsub.f32 %v339, %v345
    %v348 = vmul.f32 %v346, 1.442695
    %v349 = vpow.pop %v348
    %v350 = vmul.f32 %v347, 1.442695
    %v351 = vpow.pop %v350
    %v352 = vsel %vm186, %v349, 0.0
    %353 = vadd.xlane.f32.xlu0 %v352
    %v354 = vpop.xlane.xlu0 %353
    %v355 = vsel %vm186, %v351, 0.0
    %356 = vadd.xlane.f32.xlu0 %v355
    %v357 = vpop.xlane.xlu0 %356
    %v358 = vrcp.pop %v354
    %v359 = vrcp.pop %v357
    %v360 = vmul.f32 %v349, %v358
    %v361 = vmul.f32 %v351, %v359
    %362 = vrot.lane.b32.xlu0 %v171, 80
    %v363 = vpop.permute.xlu0 %362
    %v366 = vsel %vm186, %v360, 0
    %368 = vmatprep.subr.mxu0 0.0
    %369 = vmatpush1.msra.mxu0 %v363
    %370 = vmatprep.subr.mxu0 0.0
    %371 = vmatpush1.msra.mxu0 0.0
    %372 = vmatprep.subr.mxu0 0.0
    %373 = vmatpush1.msra.mxu0 0.0
    %374 = vmatprep.subr.mxu0 0.0
    %375 = vmatpush1.msra.mxu0 0.0
    %376 = vmatprep.subr.mxu0 0.0
    %377 = vmatpush1.msra.mxu0 0.0
    %378 = vmatprep.subr.mxu0 0.0
    %379 = vmatpush1.msra.mxu0 0.0
    %380 = vmatprep.subr.mxu0 0.0
    %381 = vmatpush1.msra.mxu0 0.0
    %382 = vmatprep.subr.mxu0 0.0
    %383 = vmatpush1.msra.mxu0 0.0
    %384 = vmatprep.subr.mxu0 0.0
    %385 = vmatpush1.msra.mxu0 0.0
    %386 = vmatprep.subr.mxu0 0.0
    %387 = vmatpush1.msra.mxu0 0.0
    %388 = vmatprep.subr.mxu0 0.0
    %389 = vmatpush1.msra.mxu0 0.0
    %390 = vmatprep.subr.mxu0 0.0
    %391 = vmatpush1.msra.mxu0 0.0
    %392 = vmatprep.subr.mxu0 0.0
    %393 = vmatpush1.msra.mxu0 0.0
    %394 = vmatprep.subr.mxu0 0.0
    %395 = vmatpush1.msra.mxu0 0.0
    %396 = vmatprep.subr.mxu0 0.0
    %397 = vmatpush1.msra.mxu0 0.0
    %398 = vmatprep.subr.mxu0 0.0
    %399 = vmatpush1.msra.mxu0 0.0
    %400 = vmatprep.subr.mxu0 0.0
    %401 = vmatpush1.msra.mxu0 0.0
    %402 = vmatprep.subr.mxu0 0.0
    %403 = vmatpush1.msra.mxu0 0.0
    %404 = vmatprep.subr.mxu0 0.0
    %405 = vmatpush1.msra.mxu0 0.0
    %406 = vmatprep.subr.mxu0 0.0
    %407 = vmatpush1.msra.mxu0 0.0
    %408 = vmatprep.subr.mxu0 0.0
    %409 = vmatpush1.msra.mxu0 0.0
    %410 = vmatprep.subr.mxu0 0.0
    %411 = vmatpush1.msra.mxu0 0.0
    %412 = vmatprep.subr.mxu0 0.0
    %413 = vmatpush1.msra.mxu0 0.0
    %414 = vmatprep.subr.mxu0 0.0
    %415 = vmatpush1.msra.mxu0 0.0
    %416 = vmatprep.subr.mxu0 0.0
    %417 = vmatpush1.msra.mxu0 0.0
    %418 = vmatprep.subr.mxu0 0.0
    %419 = vmatpush1.msra.mxu0 0.0
    %420 = vmatprep.subr.mxu0 0.0
    %421 = vmatpush1.msra.mxu0 0.0
    %422 = vmatprep.subr.mxu0 0.0
    %423 = vmatpush1.msra.mxu0 0.0
    %424 = vmatprep.subr.mxu0 0.0
    %425 = vmatpush1.msra.mxu0 0.0
    %426 = vmatprep.subr.mxu0 0.0
    %427 = vmatpush1.msra.mxu0 0.0
    %428 = vmatprep.subr.mxu0 0.0
    %429 = vmatpush1.msra.mxu0 0.0
    %430 = vmatprep.subr.mxu0 0.0
    %431 = vmatpush1.msra.mxu0 0.0
    %432 = vmatprep.mubr.f32.mxu0 0.0
    %433 = vmatmul.mubr.f32.gmra.mrb[0].mxu0 %v366
    %v434 = vpop.f32.mrb[0].mxu0
    %v435 = vadd.f32 0.0, %v434
    %v436 = vpop.f32.mrb[0].mxu0
    %437 = vdwg.mxu0
    %438 = vrot.lane.b32.xlu0 %v176, 80
    %v439 = vpop.permute.xlu0 %438
    %v442 = vsel %vm186, %v361, 0
    %444 = vmatprep.subr.mxu0 0.0
    %445 = vmatpush1.msra.mxu0 %v439
    %446 = vmatprep.subr.mxu0 0.0
    %447 = vmatpush1.msra.mxu0 0.0
    %448 = vmatprep.subr.mxu0 0.0
    %449 = vmatpush1.msra.mxu0 0.0
    %450 = vmatprep.subr.mxu0 0.0
    %451 = vmatpush1.msra.mxu0 0.0
    %452 = vmatprep.subr.mxu0 0.0
    %453 = vmatpush1.msra.mxu0 0.0
    %454 = vmatprep.subr.mxu0 0.0
    %455 = vmatpush1.msra.mxu0 0.0
    %456 = vmatprep.subr.mxu0 0.0
    %457 = vmatpush1.msra.mxu0 0.0
    %458 = vmatprep.subr.mxu0 0.0
    %459 = vmatpush1.msra.mxu0 0.0
    %460 = vmatprep.subr.mxu0 0.0
    %461 = vmatpush1.msra.mxu0 0.0
    %462 = vmatprep.subr.mxu0 0.0
    %463 = vmatpush1.msra.mxu0 0.0
    %464 = vmatprep.subr.mxu0 0.0
    %465 = vmatpush1.msra.mxu0 0.0
    %466 = vmatprep.subr.mxu0 0.0
    %467 = vmatpush1.msra.mxu0 0.0
    %468 = vmatprep.subr.mxu0 0.0
    %469 = vmatpush1.msra.mxu0 0.0
    %470 = vmatprep.subr.mxu0 0.0
    %471 = vmatpush1.msra.mxu0 0.0
    %472 = vmatprep.subr.mxu0 0.0
    %473 = vmatpush1.msra.mxu0 0.0
    %474 = vmatprep.subr.mxu0 0.0
    %475 = vmatpush1.msra.mxu0 0.0
    %476 = vmatprep.subr.mxu0 0.0
    %477 = vmatpush1.msra.mxu0 0.0
    %478 = vmatprep.subr.mxu0 0.0
    %479 = vmatpush1.msra.mxu0 0.0
    %480 = vmatprep.subr.mxu0 0.0
    %481 = vmatpush1.msra.mxu0 0.0
    %482 = vmatprep.subr.mxu0 0.0
    %483 = vmatpush1.msra.mxu0 0.0
    %484 = vmatprep.subr.mxu0 0.0
    %485 = vmatpush1.msra.mxu0 0.0
    %486 = vmatprep.subr.mxu0 0.0
    %487 = vmatpush1.msra.mxu0 0.0
    %488 = vmatprep.subr.mxu0 0.0
    %489 = vmatpush1.msra.mxu0 0.0
    %490 = vmatprep.subr.mxu0 0.0
    %491 = vmatpush1.msra.mxu0 0.0
    %492 = vmatprep.subr.mxu0 0.0
    %493 = vmatpush1.msra.mxu0 0.0
    %494 = vmatprep.subr.mxu0 0.0
    %495 = vmatpush1.msra.mxu0 0.0
    %496 = vmatprep.subr.mxu0 0.0
    %497 = vmatpush1.msra.mxu0 0.0
    %498 = vmatprep.subr.mxu0 0.0
    %499 = vmatpush1.msra.mxu0 0.0
    %500 = vmatprep.subr.mxu0 0.0
    %501 = vmatpush1.msra.mxu0 0.0
    %502 = vmatprep.subr.mxu0 0.0
    %503 = vmatpush1.msra.mxu0 0.0
    %504 = vmatprep.subr.mxu0 0.0
    %505 = vmatpush1.msra.mxu0 0.0
    %506 = vmatprep.subr.mxu0 0.0
    %507 = vmatpush1.msra.mxu0 0.0
    %508 = vmatprep.mubr.f32.mxu0 0.0
    %509 = vmatmul.mubr.f32.gmra.mrb[0].mxu0 %v442
    %v510 = vpop.f32.mrb[0].mxu0
    %v511 = vadd.f32 0.0, %v510
    %v512 = vpop.f32.mrb[0].mxu0
    %513 = vdwg.mxu0
    %514 = vrot.lane.b32.xlu0 %v171, 120
    %v515 = vpop.permute.xlu0 %514
    %v516 = vsel %vm186, %v515, 0
    %518 = vmatprep.subr.mxu0 0.0
    %519 = vmatpush1.xpose.msra.mxu0 %v189
    %520 = vmatprep.subr.mxu0 0.0
    %521 = vmatpush1.xpose.msra.mxu0 0.0
    %522 = vmatprep.subr.mxu0 0.0
    %523 = vmatpush1.xpose.msra.mxu0 0.0
    %524 = vmatprep.subr.mxu0 0.0
    %525 = vmatpush1.xpose.msra.mxu0 0.0
    %526 = vmatprep.subr.mxu0 0.0
    %527 = vmatpush1.xpose.msra.mxu0 0.0
    %528 = vmatprep.subr.mxu0 0.0
    %529 = vmatpush1.xpose.msra.mxu0 0.0
    %530 = vmatprep.subr.mxu0 0.0
    %531 = vmatpush1.xpose.msra.mxu0 0.0
    %532 = vmatprep.subr.mxu0 0.0
    %533 = vmatpush1.xpose.msra.mxu0 0.0
    %534 = vmatprep.subr.mxu0 0.0
    %535 = vmatpush1.xpose.msra.mxu0 0.0
    %536 = vmatprep.subr.mxu0 0.0
    %537 = vmatpush1.xpose.msra.mxu0 0.0
    %538 = vmatprep.subr.mxu0 0.0
    %539 = vmatpush1.xpose.msra.mxu0 0.0
    %540 = vmatprep.subr.mxu0 0.0
    %541 = vmatpush1.xpose.msra.mxu0 0.0
    %542 = vmatprep.subr.mxu0 0.0
    %543 = vmatpush1.xpose.msra.mxu0 0.0
    %544 = vmatprep.subr.mxu0 0.0
    %545 = vmatpush1.xpose.msra.mxu0 0.0
    %546 = vmatprep.subr.mxu0 0.0
    %547 = vmatpush1.xpose.msra.mxu0 0.0
    %548 = vmatprep.subr.mxu0 0.0
    %549 = vmatpush1.xpose.msra.mxu0 0.0
    %550 = vmatprep.subr.mxu0 0.0
    %551 = vmatpush1.xpose.msra.mxu0 0.0
    %552 = vmatprep.subr.mxu0 0.0
    %553 = vmatpush1.xpose.msra.mxu0 0.0
    %554 = vmatprep.subr.mxu0 0.0
    %555 = vmatpush1.xpose.msra.mxu0 0.0
    %556 = vmatprep.subr.mxu0 0.0
    %557 = vmatpush1.xpose.msra.mxu0 0.0
    %558 = vmatprep.subr.mxu0 0.0
    %559 = vmatpush1.xpose.msra.mxu0 0.0
    %560 = vmatprep.subr.mxu0 0.0
    %561 = vmatpush1.xpose.msra.mxu0 0.0
    %562 = vmatprep.subr.mxu0 0.0
    %563 = vmatpush1.xpose.msra.mxu0 0.0
    %564 = vmatprep.subr.mxu0 0.0
    %565 = vmatpush1.xpose.msra.mxu0 0.0
    %566 = vmatprep.subr.mxu0 0.0
    %567 = vmatpush1.xpose.msra.mxu0 0.0
    %568 = vmatprep.subr.mxu0 0.0
    %569 = vmatpush1.xpose.msra.mxu0 0.0
    %570 = vmatprep.subr.mxu0 0.0
    %571 = vmatpush1.xpose.msra.mxu0 0.0
    %572 = vmatprep.subr.mxu0 0.0
    %573 = vmatpush1.xpose.msra.mxu0 0.0
    %574 = vmatprep.subr.mxu0 0.0
    %575 = vmatpush1.xpose.msra.mxu0 0.0
    %576 = vmatprep.subr.mxu0 0.0
    %577 = vmatpush1.xpose.msra.mxu0 0.0
    %578 = vmatprep.subr.mxu0 0.0
    %579 = vmatpush1.xpose.msra.mxu0 0.0
    %580 = vmatprep.subr.mxu0 0.0
    %581 = vmatpush1.xpose.msra.mxu0 0.0
    %582 = vmatprep.mubr.f32.mxu0 0.0
    %583 = vmatmul.mubr.f32.gmra.mrb[0].mxu0 %v516
    %v584 = vpop.f32.mrb[0].mxu0
    %v585 = vadd.f32 0.0, %v584
    %v586 = vpop.f32.mrb[0].mxu0
    %587 = vdwg.mxu0
    %588 = vrot.lane.b32.xlu0 %v176, 120
    %v589 = vpop.permute.xlu0 %588
    %v590 = vsel %vm186, %v589, 0
    %592 = vmatprep.subr.mxu0 0.0
    %593 = vmatpush1.xpose.msra.mxu0 %v266
    %594 = vmatprep.subr.mxu0 0.0
    %595 = vmatpush1.xpose.msra.mxu0 0.0
    %596 = vmatprep.subr.mxu0 0.0
    %597 = vmatpush1.xpose.msra.mxu0 0.0
    %598 = vmatprep.subr.mxu0 0.0
    %599 = vmatpush1.xpose.msra.mxu0 0.0
    %600 = vmatprep.subr.mxu0 0.0
    %601 = vmatpush1.xpose.msra.mxu0 0.0
    %602 = vmatprep.subr.mxu0 0.0
    %603 = vmatpush1.xpose.msra.mxu0 0.0
    %604 = vmatprep.subr.mxu0 0.0
    %605 = vmatpush1.xpose.msra.mxu0 0.0
    %606 = vmatprep.subr.mxu0 0.0
    %607 = vmatpush1.xpose.msra.mxu0 0.0
    %608 = vmatprep.subr.mxu0 0.0
    %609 = vmatpush1.xpose.msra.mxu0 0.0
    %610 = vmatprep.subr.mxu0 0.0
    %611 = vmatpush1.xpose.msra.mxu0 0.0
    %612 = vmatprep.subr.mxu0 0.0
    %613 = vmatpush1.xpose.msra.mxu0 0.0
    %614 = vmatprep.subr.mxu0 0.0
    %615 = vmatpush1.xpose.msra.mxu0 0.0
    %616 = vmatprep.subr.mxu0 0.0
    %617 = vmatpush1.xpose.msra.mxu0 0.0
    %618 = vmatprep.subr.mxu0 0.0
    %619 = vmatpush1.xpose.msra.mxu0 0.0
    %620 = vmatprep.subr.mxu0 0.0
    %621 = vmatpush1.xpose.msra.mxu0 0.0
    %622 = vmatprep.subr.mxu0 0.0
    %623 = vmatpush1.xpose.msra.mxu0 0.0
    %624 = vmatprep.subr.mxu0 0.0
    %625 = vmatpush1.xpose.msra.mxu0 0.0
    %626 = vmatprep.subr.mxu0 0.0
    %627 = vmatpush1.xpose.msra.mxu0 0.0
    %628 = vmatprep.subr.mxu0 0.0
    %629 = vmatpush1.xpose.msra.mxu0 0.0
    %630 = vmatprep.subr.mxu0 0.0
    %631 = vmatpush1.xpose.msra.mxu0 0.0
    %632 = vmatprep.subr.mxu0 0.0
    %633 = vmatpush1.xpose.msra.mxu0 0.0
    %634 = vmatprep.subr.mxu0 0.0
    %635 = vmatpush1.xpose.msra.mxu0 0.0
    %636 = vmatprep.subr.mxu0 0.0
    %637 = vmatpush1.xpose.msra.mxu0 0.0
    %638 = vmatprep.subr.mxu0 0.0
    %639 = vmatpush1.xpose.msra.mxu0 0.0
    %640 = vmatprep.subr.mxu0 0.0
    %641 = vmatpush1.xpose.msra.mxu0 0.0
    %642 = vmatprep.subr.mxu0 0.0
    %643 = vmatpush1.xpose.msra.mxu0 0.0
    %644 = vmatprep.subr.mxu0 0.0
    %645 = vmatpush1.xpose.msra.mxu0 0.0
    %646 = vmatprep.subr.mxu0 0.0
    %647 = vmatpush1.xpose.msra.mxu0 0.0
    %648 = vmatprep.subr.mxu0 0.0
    %649 = vmatpush1.xpose.msra.mxu0 0.0
    %650 = vmatprep.subr.mxu0 0.0
    %651 = vmatpush1.xpose.msra.mxu0 0.0
    %652 = vmatprep.subr.mxu0 0.0
    %653 = vmatpush1.xpose.msra.mxu0 0.0
    %654 = vmatprep.subr.mxu0 0.0
    %655 = vmatpush1.xpose.msra.mxu0 0.0
    %656 = vmatprep.mubr.f32.mxu0 0.0
    %657 = vmatmul.mubr.f32.gmra.mrb[0].mxu0 %v590
    %v658 = vpop.f32.mrb[0].mxu0
    %v659 = vadd.f32 0.0, %v658
    %v660 = vpop.f32.mrb[0].mxu0
    %661 = vdwg.mxu0
    %v662 = vmul.f32 %v585, 0.35355338
    %v663 = vmul.f32 %v659, 0.35355338
    %v664 = vsel %vm186, %v662, -inf
    %665 = vmax.xlane.f32.xlu0 %v664
    %v666 = vpop.xlane.xlu0 %665
    %v667 = vsel %vm186, %v663, -inf
    %668 = vmax.xlane.f32.xlu0 %v667
    %v669 = vpop.xlane.xlu0 %668
    %v670 = vsub.f32 %v662, %v666
    %v671 = vsub.f32 %v663, %v669
    %v672 = vmul.f32 %v670, 1.442695
    %v673 = vpow.pop %v672
    %v674 = vmul.f32 %v671, 1.442695
    %v675 = vpow.pop %v674
    %v676 = vsel %vm186, %v673, 0.0
    %677 = vadd.xlane.f32.xlu0 %v676
    %v678 = vpop.xlane.xlu0 %677
    %v679 = vsel %vm186, %v675, 0.0
    %680 = vadd.xlane.f32.xlu0 %v679
    %v681 = vpop.xlane.xlu0 %680
    %v682 = vrcp.pop %v678
    %v683 = vrcp.pop %v681
    %v684 = vmul.f32 %v673, %v682
    %v685 = vmul.f32 %v675, %v683
    %v687 = vsel %vm186, %v684, 0
    %689 = vmatprep.subr.mxu0 0.0
    %690 = vmatpush1.msra.mxu0 %v363
    %691 = vmatprep.subr.mxu0 0.0
    %692 = vmatpush1.msra.mxu0 0.0
    %693 = vmatprep.subr.mxu0 0.0
    %694 = vmatpush1.msra.mxu0 0.0
    %695 = vmatprep.subr.mxu0 0.0
    %696 = vmatpush1.msra.mxu0 0.0
    %697 = vmatprep.subr.mxu0 0.0
    %698 = vmatpush1.msra.mxu0 0.0
    %699 = vmatprep.subr.mxu0 0.0
    %700 = vmatpush1.msra.mxu0 0.0
    %701 = vmatprep.subr.mxu0 0.0
    %702 = vmatpush1.msra.mxu0 0.0
    %703 = vmatprep.subr.mxu0 0.0
    %704 = vmatpush1.msra.mxu0 0.0
    %705 = vmatprep.subr.mxu0 0.0
    %706 = vmatpush1.msra.mxu0 0.0
    %707 = vmatprep.subr.mxu0 0.0
    %708 = vmatpush1.msra.mxu0 0.0
    %709 = vmatprep.subr.mxu0 0.0
    %710 = vmatpush1.msra.mxu0 0.0
    %711 = vmatprep.subr.mxu0 0.0
    %712 = vmatpush1.msra.mxu0 0.0
    %713 = vmatprep.subr.mxu0 0.0
    %714 = vmatpush1.msra.mxu0 0.0
    %715 = vmatprep.subr.mxu0 0.0
    %716 = vmatpush1.msra.mxu0 0.0
    %717 = vmatprep.subr.mxu0 0.0
    %718 = vmatpush1.msra.mxu0 0.0
    %719 = vmatprep.subr.mxu0 0.0
    %720 = vmatpush1.msra.mxu0 0.0
    %721 = vmatprep.subr.mxu0 0.0
    %722 = vmatpush1.msra.mxu0 0.0
    %723 = vmatprep.subr.mxu0 0.0
    %724 = vmatpush1.msra.mxu0 0.0
    %725 = vmatprep.subr.mxu0 0.0
    %726 = vmatpush1.msra.mxu0 0.0
    %727 = vmatprep.subr.mxu0 0.0
    %728 = vmatpush1.msra.mxu0 0.0
    %729 = vmatprep.subr.mxu0 0.0
    %730 = vmatpush1.msra.mxu0 0.0
    %731 = vmatprep.subr.mxu0 0.0
    %732 = vmatpush1.msra.mxu0 0.0
    %733 = vmatprep.subr.mxu0 0.0
    %734 = vmatpush1.msra.mxu0 0.0
    %735 = vmatprep.subr.mxu0 0.0
    %736 = vmatpush1.msra.mxu0 0.0
    %737 = vmatprep.subr.mxu0 0.0
    %738 = vmatpush1.msra.mxu0 0.0
    %739 = vmatprep.subr.mxu0 0.0
    %740 = vmatpush1.msra.mxu0 0.0
    %741 = vmatprep.subr.mxu0 0.0
    %742 = vmatpush1.msra.mxu0 0.0
    %743 = vmatprep.subr.mxu0 0.0
    %744 = vmatpush1.msra.mxu0 0.0
    %745 = vmatprep.subr.mxu0 0.0
    %746 = vmatpush1.msra.mxu0 0.0
    %747 = vmatprep.subr.mxu0 0.0
    %748 = vmatpush1.msra.mxu0 0.0
    %749 = vmatprep.subr.mxu0 0.0
    %750 = vmatpush1.msra.mxu0 0.0
    %751 = vmatprep.subr.mxu0 0.0
    %752 = vmatpush1.msra.mxu0 0.0
    %753 = vmatprep.mubr.f32.mxu0 0.0
    %754 = vmatmul.mubr.f32.gmra.mrb[0].mxu0 %v687
    %v755 = vpop.f32.mrb[0].mxu0
    %v756 = vadd.f32 0.0, %v755
    %v757 = vpop.f32.mrb[0].mxu0
    %758 = vdwg.mxu0
    %v760 = vsel %vm186, %v685, 0
    %762 = vmatprep.subr.mxu0 0.0
    %763 = vmatpush1.msra.mxu0 %v439
    %764 = vmatprep.subr.mxu0 0.0
    %765 = vmatpush1.msra.mxu0 0.0
    %766 = vmatprep.subr.mxu0 0.0
    %767 = vmatpush1.msra.mxu0 0.0
    %768 = vmatprep.subr.mxu0 0.0
    %769 = vmatpush1.msra.mxu0 0.0
    %770 = vmatprep.subr.mxu0 0.0
    %771 = vmatpush1.msra.mxu0 0.0
    %772 = vmatprep.subr.mxu0 0.0
    %773 = vmatpush1.msra.mxu0 0.0
    %774 = vmatprep.subr.mxu0 0.0
    %775 = vmatpush1.msra.mxu0 0.0
    %776 = vmatprep.subr.mxu0 0.0
    %777 = vmatpush1.msra.mxu0 0.0
    %778 = vmatprep.subr.mxu0 0.0
    %779 = vmatpush1.msra.mxu0 0.0
    %780 = vmatprep.subr.mxu0 0.0
    %781 = vmatpush1.msra.mxu0 0.0
    %782 = vmatprep.subr.mxu0 0.0
    %783 = vmatpush1.msra.mxu0 0.0
    %784 = vmatprep.subr.mxu0 0.0
    %785 = vmatpush1.msra.mxu0 0.0
    %786 = vmatprep.subr.mxu0 0.0
    %787 = vmatpush1.msra.mxu0 0.0
    %788 = vmatprep.subr.mxu0 0.0
    %789 = vmatpush1.msra.mxu0 0.0
    %790 = vmatprep.subr.mxu0 0.0
    %791 = vmatpush1.msra.mxu0 0.0
    %792 = vmatprep.subr.mxu0 0.0
    %793 = vmatpush1.msra.mxu0 0.0
    %794 = vmatprep.subr.mxu0 0.0
    %795 = vmatpush1.msra.mxu0 0.0
    %796 = vmatprep.subr.mxu0 0.0
    %797 = vmatpush1.msra.mxu0 0.0
    %798 = vmatprep.subr.mxu0 0.0
    %799 = vmatpush1.msra.mxu0 0.0
    %800 = vmatprep.subr.mxu0 0.0
    %801 = vmatpush1.msra.mxu0 0.0
    %802 = vmatprep.subr.mxu0 0.0
    %803 = vmatpush1.msra.mxu0 0.0
    %804 = vmatprep.subr.mxu0 0.0
    %805 = vmatpush1.msra.mxu0 0.0
    %806 = vmatprep.subr.mxu0 0.0
    %807 = vmatpush1.msra.mxu0 0.0
    %808 = vmatprep.subr.mxu0 0.0
    %809 = vmatpush1.msra.mxu0 0.0
    %810 = vmatprep.subr.mxu0 0.0
    %811 = vmatpush1.msra.mxu0 0.0
    %812 = vmatprep.subr.mxu0 0.0
    %813 = vmatpush1.msra.mxu0 0.0
    %814 = vmatprep.subr.mxu0 0.0
    %815 = vmatpush1.msra.mxu0 0.0
    %816 = vmatprep.subr.mxu0 0.0
    %817 = vmatpush1.msra.mxu0 0.0
    %818 = vmatprep.subr.mxu0 0.0
    %819 = vmatpush1.msra.mxu0 0.0
    %820 = vmatprep.subr.mxu0 0.0
    %821 = vmatpush1.msra.mxu0 0.0
    %822 = vmatprep.subr.mxu0 0.0
    %823 = vmatpush1.msra.mxu0 0.0
    %824 = vmatprep.subr.mxu0 0.0
    %825 = vmatpush1.msra.mxu0 0.0
    %826 = vmatprep.mubr.f32.mxu0 0.0
    %827 = vmatmul.mubr.f32.gmra.mrb[0].mxu0 %v760
    %v828 = vpop.f32.mrb[0].mxu0
    %v829 = vadd.f32 0.0, %v828
    %v830 = vpop.f32.mrb[0].mxu0
    %831 = vdwg.mxu0
    %v833 = vsel %vm186, %v756, 0
    %v836 = vsel %vm186, %v829, 0
    %838 = vmatprep.subr.mxu0 0.0
    %839 = vmatpush1.msra.mxu0 %v180
    %840 = vmatprep.subr.mxu0 0.0
    %841 = vmatpush1.msra.mxu0 0.0
    %842 = vmatprep.subr.mxu0 0.0
    %843 = vmatpush1.msra.mxu0 0.0
    %844 = vmatprep.subr.mxu0 0.0
    %845 = vmatpush1.msra.mxu0 0.0
    %846 = vmatprep.subr.mxu0 0.0
    %847 = vmatpush1.msra.mxu0 0.0
    %848 = vmatprep.subr.mxu0 0.0
    %849 = vmatpush1.msra.mxu0 0.0
    %850 = vmatprep.subr.mxu0 0.0
    %851 = vmatpush1.msra.mxu0 0.0
    %852 = vmatprep.subr.mxu0 0.0
    %853 = vmatpush1.msra.mxu0 0.0
    %854 = vmatprep.subr.mxu0 0.0
    %855 = vmatpush1.msra.mxu0 0.0
    %856 = vmatprep.subr.mxu0 0.0
    %857 = vmatpush1.msra.mxu0 0.0
    %858 = vmatprep.subr.mxu0 0.0
    %859 = vmatpush1.msra.mxu0 0.0
    %860 = vmatprep.subr.mxu0 0.0
    %861 = vmatpush1.msra.mxu0 0.0
    %862 = vmatprep.subr.mxu0 0.0
    %863 = vmatpush1.msra.mxu0 0.0
    %864 = vmatprep.subr.mxu0 0.0
    %865 = vmatpush1.msra.mxu0 0.0
    %866 = vmatprep.subr.mxu0 0.0
    %867 = vmatpush1.msra.mxu0 0.0
    %868 = vmatprep.subr.mxu0 0.0
    %869 = vmatpush1.msra.mxu0 0.0
    %870 = vmatprep.subr.mxu0 0.0
    %871 = vmatpush1.msra.mxu0 0.0
    %872 = vmatprep.subr.mxu0 0.0
    %873 = vmatpush1.msra.mxu0 0.0
    %874 = vmatprep.subr.mxu0 0.0
    %875 = vmatpush1.msra.mxu0 0.0
    %876 = vmatprep.subr.mxu0 0.0
    %877 = vmatpush1.msra.mxu0 0.0
    %878 = vmatprep.subr.mxu0 0.0
    %879 = vmatpush1.msra.mxu0 0.0
    %880 = vmatprep.subr.mxu0 0.0
    %881 = vmatpush1.msra.mxu0 0.0
    %882 = vmatprep.subr.mxu0 0.0
    %883 = vmatpush1.msra.mxu0 0.0
    %884 = vmatprep.subr.mxu0 0.0
    %885 = vmatpush1.msra.mxu0 0.0
    %886 = vmatprep.subr.mxu0 0.0
    %887 = vmatpush1.msra.mxu0 0.0
    %888 = vmatprep.subr.mxu0 0.0
    %889 = vmatpush1.msra.mxu0 0.0
    %890 = vmatprep.subr.mxu0 0.0
    %891 = vmatpush1.msra.mxu0 0.0
    %892 = vmatprep.subr.mxu0 0.0
    %893 = vmatpush1.msra.mxu0 0.0
    %894 = vmatprep.subr.mxu0 0.0
    %895 = vmatpush1.msra.mxu0 0.0
    %896 = vmatprep.subr.mxu0 0.0
    %897 = vmatpush1.msra.mxu0 0.0
    %898 = vmatprep.subr.mxu0 0.0
    %899 = vmatpush1.msra.mxu0 0.0
    %900 = vmatprep.subr.mxu0 0.0
    %901 = vmatpush1.msra.mxu0 0.0
    %902 = vmatprep.mubr.f32.mxu0 0.0
    %903 = vmatmul.mubr.f32.gmra.mrb[0].mxu0 %v833
    %v904 = vpop.f32.mrb[0].mxu0
    %v905 = vadd.f32 0.0, %v904
    %v906 = vpop.f32.mrb[0].mxu0
    %907 = vmatprep.mubr.f32.mxu0 0.0
    %908 = vmatmul.mubr.f32.gmra.mrb[0].mxu0 %v836
    %v909 = vpop.f32.mrb[0].mxu0
    %v910 = vadd.f32 0.0, %v909
    %v911 = vpop.f32.mrb[0].mxu0
    %912 = vdwg.mxu0
    %v914 = vsel %vm186, %v435, 0
    %v917 = vsel %vm186, %v511, 0
    %919 = vmatprep.subr.mxu0 0.0
    %920 = vmatpush1.msra.mxu0 %v179
    %921 = vmatprep.subr.mxu0 0.0
    %922 = vmatpush1.msra.mxu0 0.0
    %923 = vmatprep.subr.mxu0 0.0
    %924 = vmatpush1.msra.mxu0 0.0
    %925 = vmatprep.subr.mxu0 0.0
    %926 = vmatpush1.msra.mxu0 0.0
    %927 = vmatprep.subr.mxu0 0.0
    %928 = vmatpush1.msra.mxu0 0.0
    %929 = vmatprep.subr.mxu0 0.0
    %930 = vmatpush1.msra.mxu0 0.0
    %931 = vmatprep.subr.mxu0 0.0
    %932 = vmatpush1.msra.mxu0 0.0
    %933 = vmatprep.subr.mxu0 0.0
    %934 = vmatpush1.msra.mxu0 0.0
    %935 = vmatprep.subr.mxu0 0.0
    %936 = vmatpush1.msra.mxu0 0.0
    %937 = vmatprep.subr.mxu0 0.0
    %938 = vmatpush1.msra.mxu0 0.0
    %939 = vmatprep.subr.mxu0 0.0
    %940 = vmatpush1.msra.mxu0 0.0
    %941 = vmatprep.subr.mxu0 0.0
    %942 = vmatpush1.msra.mxu0 0.0
    %943 = vmatprep.subr.mxu0 0.0
    %944 = vmatpush1.msra.mxu0 0.0
    %945 = vmatprep.subr.mxu0 0.0
    %946 = vmatpush1.msra.mxu0 0.0
    %947 = vmatprep.subr.mxu0 0.0
    %948 = vmatpush1.msra.mxu0 0.0
    %949 = vmatprep.subr.mxu0 0.0
    %950 = vmatpush1.msra.mxu0 0.0
    %951 = vmatprep.subr.mxu0 0.0
    %952 = vmatpush1.msra.mxu0 0.0
    %953 = vmatprep.subr.mxu0 0.0
    %954 = vmatpush1.msra.mxu0 0.0
    %955 = vmatprep.subr.mxu0 0.0
    %956 = vmatpush1.msra.mxu0 0.0
    %957 = vmatprep.subr.mxu0 0.0
    %958 = vmatpush1.msra.mxu0 0.0
    %959 = vmatprep.subr.mxu0 0.0
    %960 = vmatpush1.msra.mxu0 0.0
    %961 = vmatprep.subr.mxu0 0.0
    %962 = vmatpush1.msra.mxu0 0.0
    %963 = vmatprep.subr.mxu0 0.0
    %964 = vmatpush1.msra.mxu0 0.0
    %965 = vmatprep.subr.mxu0 0.0
    %966 = vmatpush1.msra.mxu0 0.0
    %967 = vmatprep.subr.mxu0 0.0
    %968 = vmatpush1.msra.mxu0 0.0
    %969 = vmatprep.subr.mxu0 0.0
    %970 = vmatpush1.msra.mxu0 0.0
    %971 = vmatprep.subr.mxu0 0.0
    %972 = vmatpush1.msra.mxu0 0.0
    %973 = vmatprep.subr.mxu0 0.0
    %974 = vmatpush1.msra.mxu0 0.0
    %975 = vmatprep.subr.mxu0 0.0
    %976 = vmatpush1.msra.mxu0 0.0
    %977 = vmatprep.subr.mxu0 0.0
    %978 = vmatpush1.msra.mxu0 0.0
    %979 = vmatprep.subr.mxu0 0.0
    %980 = vmatpush1.msra.mxu0 0.0
    %981 = vmatprep.subr.mxu0 0.0
    %982 = vmatpush1.msra.mxu0 0.0
    %983 = vmatprep.mubr.f32.mxu0 0.0
    %984 = vmatmul.mubr.f32.gmra.mrb[0].mxu0 %v914
    %v985 = vpop.f32.mrb[0].mxu0
    %v986 = vadd.f32 %v905, %v985
    %v987 = vpop.f32.mrb[0].mxu0
    %988 = vmatprep.mubr.f32.mxu0 0.0
    %989 = vmatmul.mubr.f32.gmra.mrb[0].mxu0 %v917
    %v990 = vpop.f32.mrb[0].mxu0
    %v991 = vadd.f32 %v910, %v990
    %v992 = vpop.f32.mrb[0].mxu0
    %993 = vdwg.mxu0
    %994 = vrot.lane.b32.xlu0 %v171, 112
    %v995 = vpop.permute.xlu0 %994
    %996 = vrot.lane.b32.xlu0 %v171, 88
    %v997 = vpop.permute.xlu0 %996
    %v998 = vsel %vm186, %v995, 0
    %v1000 = vsel %vm186, %v997, 0
    %1002 = vmatprep.subr.mxu0 0.0
    %1003 = vmatpush1.xpose.msra.mxu0 %v1000
    %1004 = vmatprep.subr.mxu0 0.0
    %1005 = vmatpush1.xpose.msra.mxu0 0.0
    %1006 = vmatprep.subr.mxu0 0.0
    %1007 = vmatpush1.xpose.msra.mxu0 0.0
    %1008 = vmatprep.subr.mxu0 0.0
    %1009 = vmatpush1.xpose.msra.mxu0 0.0
    %1010 = vmatprep.subr.mxu0 0.0
    %1011 = vmatpush1.xpose.msra.mxu0 0.0
    %1012 = vmatprep.subr.mxu0 0.0
    %1013 = vmatpush1.xpose.msra.mxu0 0.0
    %1014 = vmatprep.subr.mxu0 0.0
    %1015 = vmatpush1.xpose.msra.mxu0 0.0
    %1016 = vmatprep.subr.mxu0 0.0
    %1017 = vmatpush1.xpose.msra.mxu0 0.0
    %1018 = vmatprep.subr.mxu0 0.0
    %1019 = vmatpush1.xpose.msra.mxu0 0.0
    %1020 = vmatprep.subr.mxu0 0.0
    %1021 = vmatpush1.xpose.msra.mxu0 0.0
    %1022 = vmatprep.subr.mxu0 0.0
    %1023 = vmatpush1.xpose.msra.mxu0 0.0
    %1024 = vmatprep.subr.mxu0 0.0
    %1025 = vmatpush1.xpose.msra.mxu0 0.0
    %1026 = vmatprep.subr.mxu0 0.0
    %1027 = vmatpush1.xpose.msra.mxu0 0.0
    %1028 = vmatprep.subr.mxu0 0.0
    %1029 = vmatpush1.xpose.msra.mxu0 0.0
    %1030 = vmatprep.subr.mxu0 0.0
    %1031 = vmatpush1.xpose.msra.mxu0 0.0
    %1032 = vmatprep.subr.mxu0 0.0
    %1033 = vmatpush1.xpose.msra.mxu0 0.0
    %1034 = vmatprep.subr.mxu0 0.0
    %1035 = vmatpush1.xpose.msra.mxu0 0.0
    %1036 = vmatprep.subr.mxu0 0.0
    %1037 = vmatpush1.xpose.msra.mxu0 0.0
    %1038 = vmatprep.subr.mxu0 0.0
    %1039 = vmatpush1.xpose.msra.mxu0 0.0
    %1040 = vmatprep.subr.mxu0 0.0
    %1041 = vmatpush1.xpose.msra.mxu0 0.0
    %1042 = vmatprep.subr.mxu0 0.0
    %1043 = vmatpush1.xpose.msra.mxu0 0.0
    %1044 = vmatprep.subr.mxu0 0.0
    %1045 = vmatpush1.xpose.msra.mxu0 0.0
    %1046 = vmatprep.subr.mxu0 0.0
    %1047 = vmatpush1.xpose.msra.mxu0 0.0
    %1048 = vmatprep.subr.mxu0 0.0
    %1049 = vmatpush1.xpose.msra.mxu0 0.0
    %1050 = vmatprep.subr.mxu0 0.0
    %1051 = vmatpush1.xpose.msra.mxu0 0.0
    %1052 = vmatprep.subr.mxu0 0.0
    %1053 = vmatpush1.xpose.msra.mxu0 0.0
    %1054 = vmatprep.subr.mxu0 0.0
    %1055 = vmatpush1.xpose.msra.mxu0 0.0
    %1056 = vmatprep.subr.mxu0 0.0
    %1057 = vmatpush1.xpose.msra.mxu0 0.0
    %1058 = vmatprep.subr.mxu0 0.0
    %1059 = vmatpush1.xpose.msra.mxu0 0.0
    %1060 = vmatprep.subr.mxu0 0.0
    %1061 = vmatpush1.xpose.msra.mxu0 0.0
    %1062 = vmatprep.subr.mxu0 0.0
    %1063 = vmatpush1.xpose.msra.mxu0 0.0
    %1064 = vmatprep.subr.mxu0 0.0
    %1065 = vmatpush1.xpose.msra.mxu0 0.0
    %1066 = vmatprep.mubr.f32.mxu0 0.0
    %1067 = vmatmul.mubr.f32.gmra.mrb[0].mxu0 %v998
    %v1068 = vpop.f32.mrb[0].mxu0
    %v1069 = vadd.f32 0.0, %v1068
    %v1070 = vpop.f32.mrb[0].mxu0
    %1071 = vdwg.mxu0
    %1072 = vrot.lane.b32.xlu0 %v176, 112
    %v1073 = vpop.permute.xlu0 %1072
    %1074 = vrot.lane.b32.xlu0 %v176, 88
    %v1075 = vpop.permute.xlu0 %1074
    %v1076 = vsel %vm186, %v1073, 0
    %v1078 = vsel %vm186, %v1075, 0
    %1080 = vmatprep.subr.mxu0 0.0
    %1081 = vmatpush1.xpose.msra.mxu0 %v1078
    %1082 = vmatprep.subr.mxu0 0.0
    %1083 = vmatpush1.xpose.msra.mxu0 0.0
    %1084 = vmatprep.subr.mxu0 0.0
    %1085 = vmatpush1.xpose.msra.mxu0 0.0
    %1086 = vmatprep.subr.mxu0 0.0
    %1087 = vmatpush1.xpose.msra.mxu0 0.0
    %1088 = vmatprep.subr.mxu0 0.0
    %1089 = vmatpush1.xpose.msra.mxu0 0.0
    %1090 = vmatprep.subr.mxu0 0.0
    %1091 = vmatpush1.xpose.msra.mxu0 0.0
    %1092 = vmatprep.subr.mxu0 0.0
    %1093 = vmatpush1.xpose.msra.mxu0 0.0
    %1094 = vmatprep.subr.mxu0 0.0
    %1095 = vmatpush1.xpose.msra.mxu0 0.0
    %1096 = vmatprep.subr.mxu0 0.0
    %1097 = vmatpush1.xpose.msra.mxu0 0.0
    %1098 = vmatprep.subr.mxu0 0.0
    %1099 = vmatpush1.xpose.msra.mxu0 0.0
    %1100 = vmatprep.subr.mxu0 0.0
    %1101 = vmatpush1.xpose.msra.mxu0 0.0
    %1102 = vmatprep.subr.mxu0 0.0
    %1103 = vmatpush1.xpose.msra.mxu0 0.0
    %1104 = vmatprep.subr.mxu0 0.0
    %1105 = vmatpush1.xpose.msra.mxu0 0.0
    %1106 = vmatprep.subr.mxu0 0.0
    %1107 = vmatpush1.xpose.msra.mxu0 0.0
    %1108 = vmatprep.subr.mxu0 0.0
    %1109 = vmatpush1.xpose.msra.mxu0 0.0
    %1110 = vmatprep.subr.mxu0 0.0
    %1111 = vmatpush1.xpose.msra.mxu0 0.0
    %1112 = vmatprep.subr.mxu0 0.0
    %1113 = vmatpush1.xpose.msra.mxu0 0.0
    %1114 = vmatprep.subr.mxu0 0.0
    %1115 = vmatpush1.xpose.msra.mxu0 0.0
    %1116 = vmatprep.subr.mxu0 0.0
    %1117 = vmatpush1.xpose.msra.mxu0 0.0
    %1118 = vmatprep.subr.mxu0 0.0
    %1119 = vmatpush1.xpose.msra.mxu0 0.0
    %1120 = vmatprep.subr.mxu0 0.0
    %1121 = vmatpush1.xpose.msra.mxu0 0.0
    %1122 = vmatprep.subr.mxu0 0.0
    %1123 = vmatpush1.xpose.msra.mxu0 0.0
    %1124 = vmatprep.subr.mxu0 0.0
    %1125 = vmatpush1.xpose.msra.mxu0 0.0
    %1126 = vmatprep.subr.mxu0 0.0
    %1127 = vmatpush1.xpose.msra.mxu0 0.0
    %1128 = vmatprep.subr.mxu0 0.0
    %1129 = vmatpush1.xpose.msra.mxu0 0.0
    %1130 = vmatprep.subr.mxu0 0.0
    %1131 = vmatpush1.xpose.msra.mxu0 0.0
    %1132 = vmatprep.subr.mxu0 0.0
    %1133 = vmatpush1.xpose.msra.mxu0 0.0
    %1134 = vmatprep.subr.mxu0 0.0
    %1135 = vmatpush1.xpose.msra.mxu0 0.0
    %1136 = vmatprep.subr.mxu0 0.0
    %1137 = vmatpush1.xpose.msra.mxu0 0.0
    %1138 = vmatprep.subr.mxu0 0.0
    %1139 = vmatpush1.xpose.msra.mxu0 0.0
    %1140 = vmatprep.subr.mxu0 0.0
    %1141 = vmatpush1.xpose.msra.mxu0 0.0
    %1142 = vmatprep.subr.mxu0 0.0
    %1143 = vmatpush1.xpose.msra.mxu0 0.0
    %1144 = vmatprep.mubr.f32.mxu0 0.0
    %1145 = vmatmul.mubr.f32.gmra.mrb[0].mxu0 %v1076
    %v1146 = vpop.f32.mrb[0].mxu0
    %v1147 = vadd.f32 0.0, %v1146
    %v1148 = vpop.f32.mrb[0].mxu0
    %1149 = vdwg.mxu0
    %v1150 = vmul.f32 %v1069, 0.35355338
    %v1151 = vmul.f32 %v1147, 0.35355338
    %v1152 = vsel %vm186, %v1150, -inf
    %1153 = vmax.xlane.f32.xlu0 %v1152
    %v1154 = vpop.xlane.xlu0 %1153
    %v1155 = vsel %vm186, %v1151, -inf
    %1156 = vmax.xlane.f32.xlu0 %v1155
    %v1157 = vpop.xlane.xlu0 %1156
    %v1158 = vsub.f32 %v1150, %v1154
    %v1159 = vsub.f32 %v1151, %v1157
    %v1160 = vmul.f32 %v1158, 1.442695
    %v1161 = vpow.pop %v1160
    %v1162 = vmul.f32 %v1159, 1.442695
    %v1163 = vpow.pop %v1162
    %v1164 = vsel %vm186, %v1161, 0.0
    %1165 = vadd.xlane.f32.xlu0 %v1164
    %v1166 = vpop.xlane.xlu0 %1165
    %v1167 = vsel %vm186, %v1163, 0.0
    %1168 = vadd.xlane.f32.xlu0 %v1167
    %v1169 = vpop.xlane.xlu0 %1168
    %v1170 = vrcp.pop %v1166
    %v1171 = vrcp.pop %v1169
    %v1172 = vmul.f32 %v1161, %v1170
    %v1173 = vmul.f32 %v1163, %v1171
    %1174 = vrot.lane.b32.xlu0 %v171, 72
    %v1175 = vpop.permute.xlu0 %1174
    %v1178 = vsel %vm186, %v1172, 0
    %1180 = vmatprep.subr.mxu0 0.0
    %1181 = vmatpush1.msra.mxu0 %v1175
    %1182 = vmatprep.subr.mxu0 0.0
    %1183 = vmatpush1.msra.mxu0 0.0
    %1184 = vmatprep.subr.mxu0 0.0
    %1185 = vmatpush1.msra.mxu0 0.0
    %1186 = vmatprep.subr.mxu0 0.0
    %1187 = vmatpush1.msra.mxu0 0.0
    %1188 = vmatprep.subr.mxu0 0.0
    %1189 = vmatpush1.msra.mxu0 0.0
    %1190 = vmatprep.subr.mxu0 0.0
    %1191 = vmatpush1.msra.mxu0 0.0
    %1192 = vmatprep.subr.mxu0 0.0
    %1193 = vmatpush1.msra.mxu0 0.0
    %1194 = vmatprep.subr.mxu0 0.0
    %1195 = vmatpush1.msra.mxu0 0.0
    %1196 = vmatprep.subr.mxu0 0.0
    %1197 = vmatpush1.msra.mxu0 0.0
    %1198 = vmatprep.subr.mxu0 0.0
    %1199 = vmatpush1.msra.mxu0 0.0
    %1200 = vmatprep.subr.mxu0 0.0
    %1201 = vmatpush1.msra.mxu0 0.0
    %1202 = vmatprep.subr.mxu0 0.0
    %1203 = vmatpush1.msra.mxu0 0.0
    %1204 = vmatprep.subr.mxu0 0.0
    %1205 = vmatpush1.msra.mxu0 0.0
    %1206 = vmatprep.subr.mxu0 0.0
    %1207 = vmatpush1.msra.mxu0 0.0
    %1208 = vmatprep.subr.mxu0 0.0
    %1209 = vmatpush1.msra.mxu0 0.0
    %1210 = vmatprep.subr.mxu0 0.0
    %1211 = vmatpush1.msra.mxu0 0.0
    %1212 = vmatprep.subr.mxu0 0.0
    %1213 = vmatpush1.msra.mxu0 0.0
    %1214 = vmatprep.subr.mxu0 0.0
    %1215 = vmatpush1.msra.mxu0 0.0
    %1216 = vmatprep.subr.mxu0 0.0
    %1217 = vmatpush1.msra.mxu0 0.0
    %1218 = vmatprep.subr.mxu0 0.0
    %1219 = vmatpush1.msra.mxu0 0.0
    %1220 = vmatprep.subr.mxu0 0.0
    %1221 = vmatpush1.msra.mxu0 0.0
    %1222 = vmatprep.subr.mxu0 0.0
    %1223 = vmatpush1.msra.mxu0 0.0
    %1224 = vmatprep.subr.mxu0 0.0
    %1225 = vmatpush1.msra.mxu0 0.0
    %1226 = vmatprep.subr.mxu0 0.0
    %1227 = vmatpush1.msra.mxu0 0.0
    %1228 = vmatprep.subr.mxu0 0.0
    %1229 = vmatpush1.msra.mxu0 0.0
    %1230 = vmatprep.subr.mxu0 0.0
    %1231 = vmatpush1.msra.mxu0 0.0
    %1232 = vmatprep.subr.mxu0 0.0
    %1233 = vmatpush1.msra.mxu0 0.0
    %1234 = vmatprep.subr.mxu0 0.0
    %1235 = vmatpush1.msra.mxu0 0.0
    %1236 = vmatprep.subr.mxu0 0.0
    %1237 = vmatpush1.msra.mxu0 0.0
    %1238 = vmatprep.subr.mxu0 0.0
    %1239 = vmatpush1.msra.mxu0 0.0
    %1240 = vmatprep.subr.mxu0 0.0
    %1241 = vmatpush1.msra.mxu0 0.0
    %1242 = vmatprep.subr.mxu0 0.0
    %1243 = vmatpush1.msra.mxu0 0.0
    %1244 = vmatprep.mubr.f32.mxu0 0.0
    %1245 = vmatmul.mubr.f32.gmra.mrb[0].mxu0 %v1178
    %v1246 = vpop.f32.mrb[0].mxu0
    %v1247 = vadd.f32 0.0, %v1246
    %v1248 = vpop.f32.mrb[0].mxu0
    %1249 = vdwg.mxu0
    %1250 = vrot.lane.b32.xlu0 %v176, 72
    %v1251 = vpop.permute.xlu0 %1250
    %v1254 = vsel %vm186, %v1173, 0
    %1256 = vmatprep.subr.mxu0 0.0
    %1257 = vmatpush1.msra.mxu0 %v1251
    %1258 = vmatprep.subr.mxu0 0.0
    %1259 = vmatpush1.msra.mxu0 0.0
    %1260 = vmatprep.subr.mxu0 0.0
    %1261 = vmatpush1.msra.mxu0 0.0
    %1262 = vmatprep.subr.mxu0 0.0
    %1263 = vmatpush1.msra.mxu0 0.0
    %1264 = vmatprep.subr.mxu0 0.0
    %1265 = vmatpush1.msra.mxu0 0.0
    %1266 = vmatprep.subr.mxu0 0.0
    %1267 = vmatpush1.msra.mxu0 0.0
    %1268 = vmatprep.subr.mxu0 0.0
    %1269 = vmatpush1.msra.mxu0 0.0
    %1270 = vmatprep.subr.mxu0 0.0
    %1271 = vmatpush1.msra.mxu0 0.0
    %1272 = vmatprep.subr.mxu0 0.0
    %1273 = vmatpush1.msra.mxu0 0.0
    %1274 = vmatprep.subr.mxu0 0.0
    %1275 = vmatpush1.msra.mxu0 0.0
    %1276 = vmatprep.subr.mxu0 0.0
    %1277 = vmatpush1.msra.mxu0 0.0
    %1278 = vmatprep.subr.mxu0 0.0
    %1279 = vmatpush1.msra.mxu0 0.0
    %1280 = vmatprep.subr.mxu0 0.0
    %1281 = vmatpush1.msra.mxu0 0.0
    %1282 = vmatprep.subr.mxu0 0.0
    %1283 = vmatpush1.msra.mxu0 0.0
    %1284 = vmatprep.subr.mxu0 0.0
    %1285 = vmatpush1.msra.mxu0 0.0
    %1286 = vmatprep.subr.mxu0 0.0
    %1287 = vmatpush1.msra.mxu0 0.0
    %1288 = vmatprep.subr.mxu0 0.0
    %1289 = vmatpush1.msra.mxu0 0.0
    %1290 = vmatprep.subr.mxu0 0.0
    %1291 = vmatpush1.msra.mxu0 0.0
    %1292 = vmatprep.subr.mxu0 0.0
    %1293 = vmatpush1.msra.mxu0 0.0
    %1294 = vmatprep.subr.mxu0 0.0
    %1295 = vmatpush1.msra.mxu0 0.0
    %1296 = vmatprep.subr.mxu0 0.0
    %1297 = vmatpush1.msra.mxu0 0.0
    %1298 = vmatprep.subr.mxu0 0.0
    %1299 = vmatpush1.msra.mxu0 0.0
    %1300 = vmatprep.subr.mxu0 0.0
    %1301 = vmatpush1.msra.mxu0 0.0
    %1302 = vmatprep.subr.mxu0 0.0
    %1303 = vmatpush1.msra.mxu0 0.0
    %1304 = vmatprep.subr.mxu0 0.0
    %1305 = vmatpush1.msra.mxu0 0.0
    %1306 = vmatprep.subr.mxu0 0.0
    %1307 = vmatpush1.msra.mxu0 0.0
    %1308 = vmatprep.subr.mxu0 0.0
    %1309 = vmatpush1.msra.mxu0 0.0
    %1310 = vmatprep.subr.mxu0 0.0
    %1311 = vmatpush1.msra.mxu0 0.0
    %1312 = vmatprep.subr.mxu0 0.0
    %1313 = vmatpush1.msra.mxu0 0.0
    %1314 = vmatprep.subr.mxu0 0.0
    %1315 = vmatpush1.msra.mxu0 0.0
    %1316 = vmatprep.subr.mxu0 0.0
    %1317 = vmatpush1.msra.mxu0 0.0
    %1318 = vmatprep.subr.mxu0 0.0
    %1319 = vmatpush1.msra.mxu0 0.0
    %1320 = vmatprep.mubr.f32.mxu0 0.0
    %1321 = vmatmul.mubr.f32.gmra.mrb[0].mxu0 %v1254
    %v1322 = vpop.f32.mrb[0].mxu0
    %v1323 = vadd.f32 0.0, %v1322
    %v1324 = vpop.f32.mrb[0].mxu0
    %1325 = vdwg.mxu0
    %v1327 = vsel %vm186, %v1247, 0
    %v1330 = vsel %vm186, %v1323, 0
    %1332 = vmatprep.subr.mxu0 0.0
    %1333 = vmatpush1.msra.mxu0 %v181
    %1334 = vmatprep.subr.mxu0 0.0
    %1335 = vmatpush1.msra.mxu0 0.0
    %1336 = vmatprep.subr.mxu0 0.0
    %1337 = vmatpush1.msra.mxu0 0.0
    %1338 = vmatprep.subr.mxu0 0.0
    %1339 = vmatpush1.msra.mxu0 0.0
    %1340 = vmatprep.subr.mxu0 0.0
    %1341 = vmatpush1.msra.mxu0 0.0
    %1342 = vmatprep.subr.mxu0 0.0
    %1343 = vmatpush1.msra.mxu0 0.0
    %1344 = vmatprep.subr.mxu0 0.0
    %1345 = vmatpush1.msra.mxu0 0.0
    %1346 = vmatprep.subr.mxu0 0.0
    %1347 = vmatpush1.msra.mxu0 0.0
    %1348 = vmatprep.subr.mxu0 0.0
    %1349 = vmatpush1.msra.mxu0 0.0
    %1350 = vmatprep.subr.mxu0 0.0
    %1351 = vmatpush1.msra.mxu0 0.0
    %1352 = vmatprep.subr.mxu0 0.0
    %1353 = vmatpush1.msra.mxu0 0.0
    %1354 = vmatprep.subr.mxu0 0.0
    %1355 = vmatpush1.msra.mxu0 0.0
    %1356 = vmatprep.subr.mxu0 0.0
    %1357 = vmatpush1.msra.mxu0 0.0
    %1358 = vmatprep.subr.mxu0 0.0
    %1359 = vmatpush1.msra.mxu0 0.0
    %1360 = vmatprep.subr.mxu0 0.0
    %1361 = vmatpush1.msra.mxu0 0.0
    %1362 = vmatprep.subr.mxu0 0.0
    %1363 = vmatpush1.msra.mxu0 0.0
    %1364 = vmatprep.subr.mxu0 0.0
    %1365 = vmatpush1.msra.mxu0 0.0
    %1366 = vmatprep.subr.mxu0 0.0
    %1367 = vmatpush1.msra.mxu0 0.0
    %1368 = vmatprep.subr.mxu0 0.0
    %1369 = vmatpush1.msra.mxu0 0.0
    %1370 = vmatprep.subr.mxu0 0.0
    %1371 = vmatpush1.msra.mxu0 0.0
    %1372 = vmatprep.subr.mxu0 0.0
    %1373 = vmatpush1.msra.mxu0 0.0
    %1374 = vmatprep.subr.mxu0 0.0
    %1375 = vmatpush1.msra.mxu0 0.0
    %1376 = vmatprep.subr.mxu0 0.0
    %1377 = vmatpush1.msra.mxu0 0.0
    %1378 = vmatprep.subr.mxu0 0.0
    %1379 = vmatpush1.msra.mxu0 0.0
    %1380 = vmatprep.subr.mxu0 0.0
    %1381 = vmatpush1.msra.mxu0 0.0
    %1382 = vmatprep.subr.mxu0 0.0
    %1383 = vmatpush1.msra.mxu0 0.0
    %1384 = vmatprep.subr.mxu0 0.0
    %1385 = vmatpush1.msra.mxu0 0.0
    %1386 = vmatprep.subr.mxu0 0.0
    %1387 = vmatpush1.msra.mxu0 0.0
    %1388 = vmatprep.subr.mxu0 0.0
    %1389 = vmatpush1.msra.mxu0 0.0
    %1390 = vmatprep.subr.mxu0 0.0
    %1391 = vmatpush1.msra.mxu0 0.0
    %1392 = vmatprep.subr.mxu0 0.0
    %1393 = vmatpush1.msra.mxu0 0.0
    %1394 = vmatprep.subr.mxu0 0.0
    %1395 = vmatpush1.msra.mxu0 0.0
    %1396 = vmatprep.mubr.f32.mxu0 0.0
    %1397 = vmatmul.mubr.f32.gmra.mrb[0].mxu0 %v1327
    %v1398 = vpop.f32.mrb[0].mxu0
    %v1399 = vadd.f32 0.0, %v1398
    %v1400 = vpop.f32.mrb[0].mxu0
    %1401 = vmatprep.mubr.f32.mxu0 0.0
    %1402 = vmatmul.mubr.f32.gmra.mrb[0].mxu0 %v1330
    %v1403 = vpop.f32.mrb[0].mxu0
    %v1404 = vadd.f32 0.0, %v1403
    %v1405 = vpop.f32.mrb[0].mxu0
    %1406 = vdwg.mxu0
    %v1407 = vadd.f32 %v986, %v1399
    %v1408 = vadd.f32 %v991, %v1404
    %1409 = vrot.lane.b32.xlu0 %v171, 104
    %v1410 = vpop.permute.xlu0 %1409
    %v1411 = vsel %vm186, %v1410, 0
    %1413 = vmatprep.subr.mxu0 0.0
    %1414 = vmatpush1.xpose.msra.mxu0 %v1000
    %1415 = vmatprep.subr.mxu0 0.0
    %1416 = vmatpush1.xpose.msra.mxu0 0.0
    %1417 = vmatprep.subr.mxu0 0.0
    %1418 = vmatpush1.xpose.msra.mxu0 0.0
    %1419 = vmatprep.subr.mxu0 0.0
    %1420 = vmatpush1.xpose.msra.mxu0 0.0
    %1421 = vmatprep.subr.mxu0 0.0
    %1422 = vmatpush1.xpose.msra.mxu0 0.0
    %1423 = vmatprep.subr.mxu0 0.0
    %1424 = vmatpush1.xpose.msra.mxu0 0.0
    %1425 = vmatprep.subr.mxu0 0.0
    %1426 = vmatpush1.xpose.msra.mxu0 0.0
    %1427 = vmatprep.subr.mxu0 0.0
    %1428 = vmatpush1.xpose.msra.mxu0 0.0
    %1429 = vmatprep.subr.mxu0 0.0
    %1430 = vmatpush1.xpose.msra.mxu0 0.0
    %1431 = vmatprep.subr.mxu0 0.0
    %1432 = vmatpush1.xpose.msra.mxu0 0.0
    %1433 = vmatprep.subr.mxu0 0.0
    %1434 = vmatpush1.xpose.msra.mxu0 0.0
    %1435 = vmatprep.subr.mxu0 0.0
    %1436 = vmatpush1.xpose.msra.mxu0 0.0
    %1437 = vmatprep.subr.mxu0 0.0
    %1438 = vmatpush1.xpose.msra.mxu0 0.0
    %1439 = vmatprep.subr.mxu0 0.0
    %1440 = vmatpush1.xpose.msra.mxu0 0.0
    %1441 = vmatprep.subr.mxu0 0.0
    %1442 = vmatpush1.xpose.msra.mxu0 0.0
    %1443 = vmatprep.subr.mxu0 0.0
    %1444 = vmatpush1.xpose.msra.mxu0 0.0
    %1445 = vmatprep.subr.mxu0 0.0
    %1446 = vmatpush1.xpose.msra.mxu0 0.0
    %1447 = vmatprep.subr.mxu0 0.0
    %1448 = vmatpush1.xpose.msra.mxu0 0.0
    %1449 = vmatprep.subr.mxu0 0.0
    %1450 = vmatpush1.xpose.msra.mxu0 0.0
    %1451 = vmatprep.subr.mxu0 0.0
    %1452 = vmatpush1.xpose.msra.mxu0 0.0
    %1453 = vmatprep.subr.mxu0 0.0
    %1454 = vmatpush1.xpose.msra.mxu0 0.0
    %1455 = vmatprep.subr.mxu0 0.0
    %1456 = vmatpush1.xpose.msra.mxu0 0.0
    %1457 = vmatprep.subr.mxu0 0.0
    %1458 = vmatpush1.xpose.msra.mxu0 0.0
    %1459 = vmatprep.subr.mxu0 0.0
    %1460 = vmatpush1.xpose.msra.mxu0 0.0
    %1461 = vmatprep.subr.mxu0 0.0
    %1462 = vmatpush1.xpose.msra.mxu0 0.0
    %1463 = vmatprep.subr.mxu0 0.0
    %1464 = vmatpush1.xpose.msra.mxu0 0.0
    %1465 = vmatprep.subr.mxu0 0.0
    %1466 = vmatpush1.xpose.msra.mxu0 0.0
    %1467 = vmatprep.subr.mxu0 0.0
    %1468 = vmatpush1.xpose.msra.mxu0 0.0
    %1469 = vmatprep.subr.mxu0 0.0
    %1470 = vmatpush1.xpose.msra.mxu0 0.0
    %1471 = vmatprep.subr.mxu0 0.0
    %1472 = vmatpush1.xpose.msra.mxu0 0.0
    %1473 = vmatprep.subr.mxu0 0.0
    %1474 = vmatpush1.xpose.msra.mxu0 0.0
    %1475 = vmatprep.subr.mxu0 0.0
    %1476 = vmatpush1.xpose.msra.mxu0 0.0
    %1477 = vmatprep.mubr.f32.mxu0 0.0
    %1478 = vmatmul.mubr.f32.gmra.mrb[0].mxu0 %v1411
    %v1479 = vpop.f32.mrb[0].mxu0
    %v1480 = vadd.f32 0.0, %v1479
    %v1481 = vpop.f32.mrb[0].mxu0
    %1482 = vdwg.mxu0
    %1483 = vrot.lane.b32.xlu0 %v176, 104
    %v1484 = vpop.permute.xlu0 %1483
    %v1485 = vsel %vm186, %v1484, 0
    %1487 = vmatprep.subr.mxu0 0.0
    %1488 = vmatpush1.xpose.msra.mxu0 %v1078
    %1489 = vmatprep.subr.mxu0 0.0
    %1490 = vmatpush1.xpose.msra.mxu0 0.0
    %1491 = vmatprep.subr.mxu0 0.0
    %1492 = vmatpush1.xpose.msra.mxu0 0.0
    %1493 = vmatprep.subr.mxu0 0.0
    %1494 = vmatpush1.xpose.msra.mxu0 0.0
    %1495 = vmatprep.subr.mxu0 0.0
    %1496 = vmatpush1.xpose.msra.mxu0 0.0
    %1497 = vmatprep.subr.mxu0 0.0
    %1498 = vmatpush1.xpose.msra.mxu0 0.0
    %1499 = vmatprep.subr.mxu0 0.0
    %1500 = vmatpush1.xpose.msra.mxu0 0.0
    %1501 = vmatprep.subr.mxu0 0.0
    %1502 = vmatpush1.xpose.msra.mxu0 0.0
    %1503 = vmatprep.subr.mxu0 0.0
    %1504 = vmatpush1.xpose.msra.mxu0 0.0
    %1505 = vmatprep.subr.mxu0 0.0
    %1506 = vmatpush1.xpose.msra.mxu0 0.0
    %1507 = vmatprep.subr.mxu0 0.0
    %1508 = vmatpush1.xpose.msra.mxu0 0.0
    %1509 = vmatprep.subr.mxu0 0.0
    %1510 = vmatpush1.xpose.msra.mxu0 0.0
    %1511 = vmatprep.subr.mxu0 0.0
    %1512 = vmatpush1.xpose.msra.mxu0 0.0
    %1513 = vmatprep.subr.mxu0 0.0
    %1514 = vmatpush1.xpose.msra.mxu0 0.0
    %1515 = vmatprep.subr.mxu0 0.0
    %1516 = vmatpush1.xpose.msra.mxu0 0.0
    %1517 = vmatprep.subr.mxu0 0.0
    %1518 = vmatpush1.xpose.msra.mxu0 0.0
    %1519 = vmatprep.subr.mxu0 0.0
    %1520 = vmatpush1.xpose.msra.mxu0 0.0
    %1521 = vmatprep.subr.mxu0 0.0
    %1522 = vmatpush1.xpose.msra.mxu0 0.0
    %1523 = vmatprep.subr.mxu0 0.0
    %1524 = vmatpush1.xpose.msra.mxu0 0.0
    %1525 = vmatprep.subr.mxu0 0.0
    %1526 = vmatpush1.xpose.msra.mxu0 0.0
    %1527 = vmatprep.subr.mxu0 0.0
    %1528 = vmatpush1.xpose.msra.mxu0 0.0
    %1529 = vmatprep.subr.mxu0 0.0
    %1530 = vmatpush1.xpose.msra.mxu0 0.0
    %1531 = vmatprep.subr.mxu0 0.0
    %1532 = vmatpush1.xpose.msra.mxu0 0.0
    %1533 = vmatprep.subr.mxu0 0.0
    %1534 = vmatpush1.xpose.msra.mxu0 0.0
    %1535 = vmatprep.subr.mxu0 0.0
    %1536 = vmatpush1.xpose.msra.mxu0 0.0
    %1537 = vmatprep.subr.mxu0 0.0
    %1538 = vmatpush1.xpose.msra.mxu0 0.0
    %1539 = vmatprep.subr.mxu0 0.0
    %1540 = vmatpush1.xpose.msra.mxu0 0.0
    %1541 = vmatprep.subr.mxu0 0.0
    %1542 = vmatpush1.xpose.msra.mxu0 0.0
    %1543 = vmatprep.subr.mxu0 0.0
    %1544 = vmatpush1.xpose.msra.mxu0 0.0
    %1545 = vmatprep.subr.mxu0 0.0
    %1546 = vmatpush1.xpose.msra.mxu0 0.0
    %1547 = vmatprep.subr.mxu0 0.0
    %1548 = vmatpush1.xpose.msra.mxu0 0.0
    %1549 = vmatprep.subr.mxu0 0.0
    %1550 = vmatpush1.xpose.msra.mxu0 0.0
    %1551 = vmatprep.mubr.f32.mxu0 0.0
    %1552 = vmatmul.mubr.f32.gmra.mrb[0].mxu0 %v1485
    %v1553 = vpop.f32.mrb[0].mxu0
    %v1554 = vadd.f32 0.0, %v1553
    %v1555 = vpop.f32.mrb[0].mxu0
    %1556 = vdwg.mxu0
    %v1557 = vmul.f32 %v1480, 0.35355338
    %v1558 = vmul.f32 %v1554, 0.35355338
    %v1559 = vsel %vm186, %v1557, -inf
    %1560 = vmax.xlane.f32.xlu0 %v1559
    %v1561 = vpop.xlane.xlu0 %1560
    %v1562 = vsel %vm186, %v1558, -inf
    %1563 = vmax.xlane.f32.xlu0 %v1562
    %v1564 = vpop.xlane.xlu0 %1563
    %v1565 = vsub.f32 %v1557, %v1561
    %v1566 = vsub.f32 %v1558, %v1564
    %v1567 = vmul.f32 %v1565, 1.442695
    %v1568 = vpow.pop %v1567
    %v1569 = vmul.f32 %v1566, 1.442695
    %v1570 = vpow.pop %v1569
    %v1571 = vsel %vm186, %v1568, 0.0
    %1572 = vadd.xlane.f32.xlu0 %v1571
    %v1573 = vpop.xlane.xlu0 %1572
    %v1574 = vsel %vm186, %v1570, 0.0
    %1575 = vadd.xlane.f32.xlu0 %v1574
    %v1576 = vpop.xlane.xlu0 %1575
    %v1577 = vrcp.pop %v1573
    %v1578 = vrcp.pop %v1576
    %v1579 = vmul.f32 %v1568, %v1577
    %v1580 = vmul.f32 %v1570, %v1578
    %v1582 = vsel %vm186, %v1579, 0
    %1584 = vmatprep.subr.mxu0 0.0
    %1585 = vmatpush1.msra.mxu0 %v1175
    %1586 = vmatprep.subr.mxu0 0.0
    %1587 = vmatpush1.msra.mxu0 0.0
    %1588 = vmatprep.subr.mxu0 0.0
    %1589 = vmatpush1.msra.mxu0 0.0
    %1590 = vmatprep.subr.mxu0 0.0
    %1591 = vmatpush1.msra.mxu0 0.0
    %1592 = vmatprep.subr.mxu0 0.0
    %1593 = vmatpush1.msra.mxu0 0.0
    %1594 = vmatprep.subr.mxu0 0.0
    %1595 = vmatpush1.msra.mxu0 0.0
    %1596 = vmatprep.subr.mxu0 0.0
    %1597 = vmatpush1.msra.mxu0 0.0
    %1598 = vmatprep.subr.mxu0 0.0
    %1599 = vmatpush1.msra.mxu0 0.0
    %1600 = vmatprep.subr.mxu0 0.0
    %1601 = vmatpush1.msra.mxu0 0.0
    %1602 = vmatprep.subr.mxu0 0.0
    %1603 = vmatpush1.msra.mxu0 0.0
    %1604 = vmatprep.subr.mxu0 0.0
    %1605 = vmatpush1.msra.mxu0 0.0
    %1606 = vmatprep.subr.mxu0 0.0
    %1607 = vmatpush1.msra.mxu0 0.0
    %1608 = vmatprep.subr.mxu0 0.0
    %1609 = vmatpush1.msra.mxu0 0.0
    %1610 = vmatprep.subr.mxu0 0.0
    %1611 = vmatpush1.msra.mxu0 0.0
    %1612 = vmatprep.subr.mxu0 0.0
    %1613 = vmatpush1.msra.mxu0 0.0
    %1614 = vmatprep.subr.mxu0 0.0
    %1615 = vmatpush1.msra.mxu0 0.0
    %1616 = vmatprep.subr.mxu0 0.0
    %1617 = vmatpush1.msra.mxu0 0.0
    %1618 = vmatprep.subr.mxu0 0.0
    %1619 = vmatpush1.msra.mxu0 0.0
    %1620 = vmatprep.subr.mxu0 0.0
    %1621 = vmatpush1.msra.mxu0 0.0
    %1622 = vmatprep.subr.mxu0 0.0
    %1623 = vmatpush1.msra.mxu0 0.0
    %1624 = vmatprep.subr.mxu0 0.0
    %1625 = vmatpush1.msra.mxu0 0.0
    %1626 = vmatprep.subr.mxu0 0.0
    %1627 = vmatpush1.msra.mxu0 0.0
    %1628 = vmatprep.subr.mxu0 0.0
    %1629 = vmatpush1.msra.mxu0 0.0
    %1630 = vmatprep.subr.mxu0 0.0
    %1631 = vmatpush1.msra.mxu0 0.0
    %1632 = vmatprep.subr.mxu0 0.0
    %1633 = vmatpush1.msra.mxu0 0.0
    %1634 = vmatprep.subr.mxu0 0.0
    %1635 = vmatpush1.msra.mxu0 0.0
    %1636 = vmatprep.subr.mxu0 0.0
    %1637 = vmatpush1.msra.mxu0 0.0
    %1638 = vmatprep.subr.mxu0 0.0
    %1639 = vmatpush1.msra.mxu0 0.0
    %1640 = vmatprep.subr.mxu0 0.0
    %1641 = vmatpush1.msra.mxu0 0.0
    %1642 = vmatprep.subr.mxu0 0.0
    %1643 = vmatpush1.msra.mxu0 0.0
    %1644 = vmatprep.subr.mxu0 0.0
    %1645 = vmatpush1.msra.mxu0 0.0
    %1646 = vmatprep.subr.mxu0 0.0
    %1647 = vmatpush1.msra.mxu0 0.0
    %1648 = vmatprep.mubr.f32.mxu0 0.0
    %1649 = vmatmul.mubr.f32.gmra.mrb[0].mxu0 %v1582
    %v1650 = vpop.f32.mrb[0].mxu0
    %v1651 = vadd.f32 0.0, %v1650
    %v1652 = vpop.f32.mrb[0].mxu0
    %1653 = vdwg.mxu0
    %v1655 = vsel %vm186, %v1580, 0
    %1657 = vmatprep.subr.mxu0 0.0
    %1658 = vmatpush1.msra.mxu0 %v1251
    %1659 = vmatprep.subr.mxu0 0.0
    %1660 = vmatpush1.msra.mxu0 0.0
    %1661 = vmatprep.subr.mxu0 0.0
    %1662 = vmatpush1.msra.mxu0 0.0
    %1663 = vmatprep.subr.mxu0 0.0
    %1664 = vmatpush1.msra.mxu0 0.0
    %1665 = vmatprep.subr.mxu0 0.0
    %1666 = vmatpush1.msra.mxu0 0.0
    %1667 = vmatprep.subr.mxu0 0.0
    %1668 = vmatpush1.msra.mxu0 0.0
    %1669 = vmatprep.subr.mxu0 0.0
    %1670 = vmatpush1.msra.mxu0 0.0
    %1671 = vmatprep.subr.mxu0 0.0
    %1672 = vmatpush1.msra.mxu0 0.0
    %1673 = vmatprep.subr.mxu0 0.0
    %1674 = vmatpush1.msra.mxu0 0.0
    %1675 = vmatprep.subr.mxu0 0.0
    %1676 = vmatpush1.msra.mxu0 0.0
    %1677 = vmatprep.subr.mxu0 0.0
    %1678 = vmatpush1.msra.mxu0 0.0
    %1679 = vmatprep.subr.mxu0 0.0
    %1680 = vmatpush1.msra.mxu0 0.0
    %1681 = vmatprep.subr.mxu0 0.0
    %1682 = vmatpush1.msra.mxu0 0.0
    %1683 = vmatprep.subr.mxu0 0.0
    %1684 = vmatpush1.msra.mxu0 0.0
    %1685 = vmatprep.subr.mxu0 0.0
    %1686 = vmatpush1.msra.mxu0 0.0
    %1687 = vmatprep.subr.mxu0 0.0
    %1688 = vmatpush1.msra.mxu0 0.0
    %1689 = vmatprep.subr.mxu0 0.0
    %1690 = vmatpush1.msra.mxu0 0.0
    %1691 = vmatprep.subr.mxu0 0.0
    %1692 = vmatpush1.msra.mxu0 0.0
    %1693 = vmatprep.subr.mxu0 0.0
    %1694 = vmatpush1.msra.mxu0 0.0
    %1695 = vmatprep.subr.mxu0 0.0
    %1696 = vmatpush1.msra.mxu0 0.0
    %1697 = vmatprep.subr.mxu0 0.0
    %1698 = vmatpush1.msra.mxu0 0.0
    %1699 = vmatprep.subr.mxu0 0.0
    %1700 = vmatpush1.msra.mxu0 0.0
    %1701 = vmatprep.subr.mxu0 0.0
    %1702 = vmatpush1.msra.mxu0 0.0
    %1703 = vmatprep.subr.mxu0 0.0
    %1704 = vmatpush1.msra.mxu0 0.0
    %1705 = vmatprep.subr.mxu0 0.0
    %1706 = vmatpush1.msra.mxu0 0.0
    %1707 = vmatprep.subr.mxu0 0.0
    %1708 = vmatpush1.msra.mxu0 0.0
    %1709 = vmatprep.subr.mxu0 0.0
    %1710 = vmatpush1.msra.mxu0 0.0
    %1711 = vmatprep.subr.mxu0 0.0
    %1712 = vmatpush1.msra.mxu0 0.0
    %1713 = vmatprep.subr.mxu0 0.0
    %1714 = vmatpush1.msra.mxu0 0.0
    %1715 = vmatprep.subr.mxu0 0.0
    %1716 = vmatpush1.msra.mxu0 0.0
    %1717 = vmatprep.subr.mxu0 0.0
    %1718 = vmatpush1.msra.mxu0 0.0
    %1719 = vmatprep.subr.mxu0 0.0
    %1720 = vmatpush1.msra.mxu0 0.0
    %1721 = vmatprep.mubr.f32.mxu0 0.0
    %1722 = vmatmul.mubr.f32.gmra.mrb[0].mxu0 %v1655
    %v1723 = vpop.f32.mrb[0].mxu0
    %v1724 = vadd.f32 0.0, %v1723
    %v1725 = vpop.f32.mrb[0].mxu0
    %1726 = vdwg.mxu0
    %v1728 = vsel %vm186, %v1651, 0
    %v1731 = vsel %vm186, %v1724, 0
    %1733 = vmatprep.subr.mxu0 0.0
    %1734 = vmatpush1.msra.mxu0 %v182
    %1735 = vmatprep.subr.mxu0 0.0
    %1736 = vmatpush1.msra.mxu0 0.0
    %1737 = vmatprep.subr.mxu0 0.0
    %1738 = vmatpush1.msra.mxu0 0.0
    %1739 = vmatprep.subr.mxu0 0.0
    %1740 = vmatpush1.msra.mxu0 0.0
    %1741 = vmatprep.subr.mxu0 0.0
    %1742 = vmatpush1.msra.mxu0 0.0
    %1743 = vmatprep.subr.mxu0 0.0
    %1744 = vmatpush1.msra.mxu0 0.0
    %1745 = vmatprep.subr.mxu0 0.0
    %1746 = vmatpush1.msra.mxu0 0.0
    %1747 = vmatprep.subr.mxu0 0.0
    %1748 = vmatpush1.msra.mxu0 0.0
    %1749 = vmatprep.subr.mxu0 0.0
    %1750 = vmatpush1.msra.mxu0 0.0
    %1751 = vmatprep.subr.mxu0 0.0
    %1752 = vmatpush1.msra.mxu0 0.0
    %1753 = vmatprep.subr.mxu0 0.0
    %1754 = vmatpush1.msra.mxu0 0.0
    %1755 = vmatprep.subr.mxu0 0.0
    %1756 = vmatpush1.msra.mxu0 0.0
    %1757 = vmatprep.subr.mxu0 0.0
    %1758 = vmatpush1.msra.mxu0 0.0
    %1759 = vmatprep.subr.mxu0 0.0
    %1760 = vmatpush1.msra.mxu0 0.0
    %1761 = vmatprep.subr.mxu0 0.0
    %1762 = vmatpush1.msra.mxu0 0.0
    %1763 = vmatprep.subr.mxu0 0.0
    %1764 = vmatpush1.msra.mxu0 0.0
    %1765 = vmatprep.subr.mxu0 0.0
    %1766 = vmatpush1.msra.mxu0 0.0
    %1767 = vmatprep.subr.mxu0 0.0
    %1768 = vmatpush1.msra.mxu0 0.0
    %1769 = vmatprep.subr.mxu0 0.0
    %1770 = vmatpush1.msra.mxu0 0.0
    %1771 = vmatprep.subr.mxu0 0.0
    %1772 = vmatpush1.msra.mxu0 0.0
    %1773 = vmatprep.subr.mxu0 0.0
    %1774 = vmatpush1.msra.mxu0 0.0
    %1775 = vmatprep.subr.mxu0 0.0
    %1776 = vmatpush1.msra.mxu0 0.0
    %1777 = vmatprep.subr.mxu0 0.0
    %1778 = vmatpush1.msra.mxu0 0.0
    %1779 = vmatprep.subr.mxu0 0.0
    %1780 = vmatpush1.msra.mxu0 0.0
    %1781 = vmatprep.subr.mxu0 0.0
    %1782 = vmatpush1.msra.mxu0 0.0
    %1783 = vmatprep.subr.mxu0 0.0
    %1784 = vmatpush1.msra.mxu0 0.0
    %1785 = vmatprep.subr.mxu0 0.0
    %1786 = vmatpush1.msra.mxu0 0.0
    %1787 = vmatprep.subr.mxu0 0.0
    %1788 = vmatpush1.msra.mxu0 0.0
    %1789 = vmatprep.subr.mxu0 0.0
    %1790 = vmatpush1.msra.mxu0 0.0
    %1791 = vmatprep.subr.mxu0 0.0
    %1792 = vmatpush1.msra.mxu0 0.0
    %1793 = vmatprep.subr.mxu0 0.0
    %1794 = vmatpush1.msra.mxu0 0.0
    %1795 = vmatprep.subr.mxu0 0.0
    %1796 = vmatpush1.msra.mxu0 0.0
    %1797 = vmatprep.mubr.f32.mxu0 0.0
    %1798 = vmatmul.mubr.f32.gmra.mrb[0].mxu0 %v1728
    %v1799 = vpop.f32.mrb[0].mxu0
    %v1800 = vadd.f32 0.0, %v1799
    %v1801 = vpop.f32.mrb[0].mxu0
    %1802 = vmatprep.mubr.f32.mxu0 0.0
    %1803 = vmatmul.mubr.f32.gmra.mrb[0].mxu0 %v1731
    %v1804 = vpop.f32.mrb[0].mxu0
    %v1805 = vadd.f32 0.0, %v1804
    %v1806 = vpop.f32.mrb[0].mxu0
    %1807 = vdwg.mxu0
    %v1808 = vadd.f32 %v1407, %v1800
    %v1809 = vadd.f32 %v1408, %v1805
    %v1810 = vadd.f32 %v50, %v1808
    %v1811 = vadd.f32 %v51, %v1809
    %v1812 = vld [vmem:[#allocation5 + $0x2] sm:$0x1]
    %v1813 = vld [vmem:[#allocation5 + $0x3] sm:$0x1]
    %v1814 = vsel %vm54, %v1810, 0.0
    %1815 = vadd.xlane.f32.xlu0 %v1814
    %v1816 = vpop.xlane.xlu0 %1815
    %v1817 = vsel %vm54, %v1811, 0.0
    %1818 = vadd.xlane.f32.xlu0 %v1817
    %v1819 = vpop.xlane.xlu0 %1818
    %v1820 = vmul.f32 %v1816, %v61
    %v1821 = vmul.f32 %v1819, %v61
    %v1822 = vsub.f32 %v1810, %v1820
    %v1823 = vsub.f32 %v1811, %v1821
    %v1824 = vmul.f32 %v1822, %v1822
    %v1825 = vmul.f32 %v1823, %v1823
    %v1826 = vsel %vm54, %v1824, 0.0
    %1827 = vadd.xlane.f32.xlu0 %v1826
    %v1828 = vpop.xlane.xlu0 %1827
    %v1829 = vsel %vm54, %v1825, 0.0
    %1830 = vadd.xlane.f32.xlu0 %v1829
    %v1831 = vpop.xlane.xlu0 %1830
    %v1832 = vmul.f32 %v1828, %v61
    %v1833 = vmul.f32 %v1831, %v61
    %v1834 = vadd.f32 %v1832, 1e-06
    %v1835 = vadd.f32 %v1833, 1e-06
    %v1836 = vrsqrt.pop %v1834
    %v1837 = vrsqrt.pop %v1835
    %v1838 = vmul.f32 %v1822, %v1836
    %v1839 = vmul.f32 %v1823, %v1837
    %v1840 = vlaneseq
    %v1841 = vshrl.u32 %v1840, 7
    %v1842 = vsub.s32 0, %v1841
    %v1843 = vrot.slane %v1812, %v1842
    %v1844 = vmul.f32 %v1838, %v1843
    %v1845 = vmul.f32 %v1839, %v1843
    %v1846 = vlaneseq
    %v1847 = vshrl.u32 %v1846, 7
    %v1848 = vsub.s32 0, %v1847
    %v1849 = vrot.slane %v1813, %v1848
    %v1850 = vadd.f32 %v1844, %v1849
    %v1851 = vadd.f32 %v1845, %v1849
    %v1852 = vld [vmem:[%s4] sm:$0xff]
    %v1853 = vld [vmem:[%s4 + $0x8] sm:$0xff]
    %v1854 = vld [vmem:[%s4 + $0x10] sm:$0xff]
    %v1855 = vld [vmem:[%s4 + $0x18] sm:$0xff]
    %v1857 = vsel %vm54, %v1850, 0
    %v1860 = vsel %vm54, %v1851, 0
    %1862 = vmatprep.subr.mxu0 0.0
    %1863 = vmatpush1.msra.mxu0 %v1852
    %1864 = vmatprep.subr.mxu0 0.0
    %1865 = vmatpush1.msra.mxu0 %v1853
    %1866 = vmatprep.subr.mxu0 0.0
    %1867 = vmatpush1.msra.mxu0 %v1854
    %1868 = vmatprep.subr.mxu0 0.0
    %1869 = vmatpush1.msra.mxu0 %v1855
    %1870 = vmatprep.subr.mxu0 0.0
    %1871 = vmatpush1.msra.mxu0 0.0
    %1872 = vmatprep.subr.mxu0 0.0
    %1873 = vmatpush1.msra.mxu0 0.0
    %1874 = vmatprep.subr.mxu0 0.0
    %1875 = vmatpush1.msra.mxu0 0.0
    %1876 = vmatprep.subr.mxu0 0.0
    %1877 = vmatpush1.msra.mxu0 0.0
    %1878 = vmatprep.subr.mxu0 0.0
    %1879 = vmatpush1.msra.mxu0 0.0
    %1880 = vmatprep.subr.mxu0 0.0
    %1881 = vmatpush1.msra.mxu0 0.0
    %1882 = vmatprep.subr.mxu0 0.0
    %1883 = vmatpush1.msra.mxu0 0.0
    %1884 = vmatprep.subr.mxu0 0.0
    %1885 = vmatpush1.msra.mxu0 0.0
    %1886 = vmatprep.subr.mxu0 0.0
    %1887 = vmatpush1.msra.mxu0 0.0
    %1888 = vmatprep.subr.mxu0 0.0
    %1889 = vmatpush1.msra.mxu0 0.0
    %1890 = vmatprep.subr.mxu0 0.0
    %1891 = vmatpush1.msra.mxu0 0.0
    %1892 = vmatprep.subr.mxu0 0.0
    %1893 = vmatpush1.msra.mxu0 0.0
    %1894 = vmatprep.subr.mxu0 0.0
    %1895 = vmatpush1.msra.mxu0 0.0
    %1896 = vmatprep.subr.mxu0 0.0
    %1897 = vmatpush1.msra.mxu0 0.0
    %1898 = vmatprep.subr.mxu0 0.0
    %1899 = vmatpush1.msra.mxu0 0.0
    %1900 = vmatprep.subr.mxu0 0.0
    %1901 = vmatpush1.msra.mxu0 0.0
    %1902 = vmatprep.subr.mxu0 0.0
    %1903 = vmatpush1.msra.mxu0 0.0
    %1904 = vmatprep.subr.mxu0 0.0
    %1905 = vmatpush1.msra.mxu0 0.0
    %1906 = vmatprep.subr.mxu0 0.0
    %1907 = vmatpush1.msra.mxu0 0.0
    %1908 = vmatprep.subr.mxu0 0.0
    %1909 = vmatpush1.msra.mxu0 0.0
    %1910 = vmatprep.subr.mxu0 0.0
    %1911 = vmatpush1.msra.mxu0 0.0
    %1912 = vmatprep.subr.mxu0 0.0
    %1913 = vmatpush1.msra.mxu0 0.0
    %1914 = vmatprep.subr.mxu0 0.0
    %1915 = vmatpush1.msra.mxu0 0.0
    %1916 = vmatprep.subr.mxu0 0.0
    %1917 = vmatpush1.msra.mxu0 0.0
    %1918 = vmatprep.subr.mxu0 0.0
    %1919 = vmatpush1.msra.mxu0 0.0
    %1920 = vmatprep.subr.mxu0 0.0
    %1921 = vmatpush1.msra.mxu0 0.0
    %1922 = vmatprep.subr.mxu0 0.0
    %1923 = vmatpush1.msra.mxu0 0.0
    %1924 = vmatprep.subr.mxu0 0.0
    %1925 = vmatpush1.msra.mxu0 0.0
    %1926 = vmatprep.mubr.f32.mxu0 0.0
    %1927 = vmatmul.mubr.f32.gmra.mrb[0].mxu0 %v1857
    %v1928 = vpop.f32.mrb[0].mxu0
    %v1929 = vadd.f32 0.0, %v1928
    %v1930 = vpop.f32.mrb[0].mxu0
    %1931 = vmatprep.mubr.f32.mxu0 0.0
    %1932 = vmatmul.mubr.f32.gmra.mrb[0].mxu0 %v1860
    %v1933 = vpop.f32.mrb[0].mxu0
    %v1934 = vadd.f32 0.0, %v1933
    %v1935 = vpop.f32.mrb[0].mxu0
    %1936 = vdwg.mxu0
    %v1937 = vxor.u32 %v1929, 2147483648
    %v1938 = vxor.u32 %v1934, 2147483648
    %v1939 = vmul.f32 %v1937, 1.442695
    %v1940 = vpow.pop %v1939
    %v1941 = vmul.f32 %v1938, 1.442695
    %v1942 = vpow.pop %v1941
    %v1943 = vadd.f32 %v1940, 1.0
    %v1944 = vadd.f32 %v1942, 1.0
    %v1945 = vrcp.pop %v1943
    %v1946 = vmul.f32 1.0, %v1945
    %v1947 = vrcp.pop %v1944
    %v1948 = vmul.f32 1.0, %v1947
    %v1949 = vmul.f32 %v1929, %v1946
    %v1950 = vmul.f32 %v1934, %v1948
    %1953 = vrot.lane.b32.xlu0 %v1929, 64
    %v1954 = vpop.permute.xlu0 %1953
    %1955 = vrot.lane.b32.xlu0 %v1934, 64
    %v1956 = vpop.permute.xlu0 %1955
    %v1959 = vmul.f32 %v1949, %v1954
    %v1960 = vmul.f32 %v1950, %v1956
    %v1961 = vld [vmem:[%s5] sm:$0xff]
    %v1962 = vld [vmem:[%s5 + $0x8] sm:$0xff]
    %v1963 = vld [vmem:[%s5 + $0x10] sm:$0xff]
    %v1964 = vld [vmem:[%s5 + $0x18] sm:$0xff]
    %v1965 = vld [vmem:[%s5 + $0x20] sm:$0xff]
    %v1966 = vld [vmem:[%s5 + $0x28] sm:$0xff]
    %v1967 = vld [vmem:[%s5 + $0x30] sm:$0xff]
    %v1968 = vld [vmem:[%s5 + $0x38] sm:$0xff]
    %vm1969 = vcmask 523264
    %v1971 = vsel %vm1969, %v1959, 0
    %v1974 = vsel %vm1969, %v1960, 0
    %1976 = vmatprep.subr.mxu0 0.0
    %1977 = vmatpush1.msra.mxu0 %v1961
    %1978 = vmatprep.subr.mxu0 0.0
    %1979 = vmatpush1.msra.mxu0 %v1962
    %1980 = vmatprep.subr.mxu0 0.0
    %1981 = vmatpush1.msra.mxu0 %v1963
    %1982 = vmatprep.subr.mxu0 0.0
    %1983 = vmatpush1.msra.mxu0 %v1964
    %1984 = vmatprep.subr.mxu0 0.0
    %1985 = vmatpush1.msra.mxu0 %v1965
    %1986 = vmatprep.subr.mxu0 0.0
    %1987 = vmatpush1.msra.mxu0 %v1966
    %1988 = vmatprep.subr.mxu0 0.0
    %1989 = vmatpush1.msra.mxu0 %v1967
    %1990 = vmatprep.subr.mxu0 0.0
    %1991 = vmatpush1.msra.mxu0 %v1968
    %1992 = vmatprep.subr.mxu0 0.0
    %1993 = vmatpush1.msra.mxu0 0.0
    %1994 = vmatprep.subr.mxu0 0.0
    %1995 = vmatpush1.msra.mxu0 0.0
    %1996 = vmatprep.subr.mxu0 0.0
    %1997 = vmatpush1.msra.mxu0 0.0
    %1998 = vmatprep.subr.mxu0 0.0
    %1999 = vmatpush1.msra.mxu0 0.0
    %2000 = vmatprep.subr.mxu0 0.0
    %2001 = vmatpush1.msra.mxu0 0.0
    %2002 = vmatprep.subr.mxu0 0.0
    %2003 = vmatpush1.msra.mxu0 0.0
    %2004 = vmatprep.subr.mxu0 0.0
    %2005 = vmatpush1.msra.mxu0 0.0
    %2006 = vmatprep.subr.mxu0 0.0
    %2007 = vmatpush1.msra.mxu0 0.0
    %2008 = vmatprep.subr.mxu0 0.0
    %2009 = vmatpush1.msra.mxu0 0.0
    %2010 = vmatprep.subr.mxu0 0.0
    %2011 = vmatpush1.msra.mxu0 0.0
    %2012 = vmatprep.subr.mxu0 0.0
    %2013 = vmatpush1.msra.mxu0 0.0
    %2014 = vmatprep.subr.mxu0 0.0
    %2015 = vmatpush1.msra.mxu0 0.0
    %2016 = vmatprep.subr.mxu0 0.0
    %2017 = vmatpush1.msra.mxu0 0.0
    %2018 = vmatprep.subr.mxu0 0.0
    %2019 = vmatpush1.msra.mxu0 0.0
    %2020 = vmatprep.subr.mxu0 0.0
    %2021 = vmatpush1.msra.mxu0 0.0
    %2022 = vmatprep.subr.mxu0 0.0
    %2023 = vmatpush1.msra.mxu0 0.0
    %2024 = vmatprep.subr.mxu0 0.0
    %2025 = vmatpush1.msra.mxu0 0.0
    %2026 = vmatprep.subr.mxu0 0.0
    %2027 = vmatpush1.msra.mxu0 0.0
    %2028 = vmatprep.subr.mxu0 0.0
    %2029 = vmatpush1.msra.mxu0 0.0
    %2030 = vmatprep.subr.mxu0 0.0
    %2031 = vmatpush1.msra.mxu0 0.0
    %2032 = vmatprep.subr.mxu0 0.0
    %2033 = vmatpush1.msra.mxu0 0.0
    %2034 = vmatprep.subr.mxu0 0.0
    %2035 = vmatpush1.msra.mxu0 0.0
    %2036 = vmatprep.subr.mxu0 0.0
    %2037 = vmatpush1.msra.mxu0 0.0
    %2038 = vmatprep.subr.mxu0 0.0
    %2039 = vmatpush1.msra.mxu0 0.0
    %2040 = vmatprep.mubr.f32.mxu0 0.0
    %2041 = vmatmul.mubr.f32.gmra.mrb[0].mxu0 %v1971
    %v2042 = vpop.f32.mrb[0].mxu0
    %v2043 = vadd.f32 0.0, %v2042
    %v2044 = vpop.f32.mrb[0].mxu0
    %2045 = vmatprep.mubr.f32.mxu0 0.0
    %2046 = vmatmul.mubr.f32.gmra.mrb[0].mxu0 %v1974
    %v2047 = vpop.f32.mrb[0].mxu0
    %v2048 = vadd.f32 0.0, %v2047
    %v2049 = vpop.f32.mrb[0].mxu0
    %2050 = vdwg.mxu0
    %v2051 = vadd.f32 %v1810, %v2043
    %v2052 = vadd.f32 %v1811, %v2048
    %2053 = vst.msk [vmem:[#allocation7] sm:$0xff] %vm54, %v2051
    %2054 = vst.msk [vmem:[#allocation7 + $0x8] sm:$0xff] %vm54, %v2052
    // Predicated region
    $region34: #{tpu_custom_call.1} parent=1 // pred_check
      _
    $region35: #{tpu_custom_call.1} parent=1 // pred_check_branch
      %2056 = sbr.rel (0) target = $region37
    $region36: #{tpu_custom_call.1} parent=1 // pred_region
      %s2058 = ssub.s32 256, 256
      %2059 = vsyncadd [#allocation4], %s2058
      %s2060 = sshll.u32 [#allocation7], 4
      %s2061 = int_to_ptr.vmem [resolvable:$true] %s2060
      %2066 = dma.vmem_to_hbm [thread:$0]  %s2061, 256, %s6, [#allocation4], 128, 128, 8
    $region37: #{tpu_custom_call.1} parent=1 // pred_fallthru
      _
    // Predicated region
    $region38: #{tpu_custom_call.1} parent=1 // pred_check
      _
    $region39: #{tpu_custom_call.1} parent=1 // pred_check_branch
      %2068 = sbr.rel (0) target = $region41
    $region40: #{tpu_custom_call.1} parent=1 // pred_region
      %2069 = dma.done [#allocation4], 256
    $region41: #{tpu_custom_call.1} parent=1 // pred_fallthru
      _
    %2070 = vsyncpa [#allocation3], 1
    %2071 = vsyncpa [#allocation6], 1
    %2072 = vsyncpa [#allocation4], 1

</llo_original>
